<compile_context>
chip_gen: v7x
topology: tpu7x:2x2x1
jax: 0.10.0
libtpu: 0.0.40
codegen_flags: <defaults>
</compile_context>

<pallas_src>
import jax
import jax.numpy as jnp
from jax.experimental import pallas as pl
from jax.experimental.pallas import tpu as pltpu

LN_EPS = 1e-5                   # torch nn.LayerNorm default
MATMUL_DTYPE = jnp.bfloat16     # MXU operand dtype (accumulation stays f32)


def _layernorm(x, gamma, beta):
    mu = jnp.mean(x, axis=-1, keepdims=True)
    var = jnp.mean(jnp.square(x - mu), axis=-1, keepdims=True)
    return (x - mu) * jax.lax.rsqrt(var + LN_EPS) * gamma + beta


def _make_layer_kernel(heads, dim_head):
    inner = heads * dim_head
    md = MATMUL_DTYPE

    def kernel(x_ref, g1_ref, be1_ref, wqkv_ref, wout_ref, bout_ref,
               g2_ref, be2_ref, w1_ref, b1_ref, w2_ref, b2_ref,
               o_ref, qkvh_scr):
        layer = pl.program_id(1)

        # Depth is the innermost ("arbitrary") grid axis and the output block
        # index is constant along it -> o_ref is a VMEM-resident activation
        # accumulator.  Initialize it from the input at layer 0.
        @pl.when(layer == 0)
        def _():
            o_ref[...] = x_ref[...]

        x = o_ref[0]                                           # (N, D) f32

        # ------------------------- attention block -------------------------
        xn = _layernorm(x, g1_ref[0], be1_ref[0])
        qkv = jnp.dot(xn.astype(md), wqkv_ref[0],
                      preferred_element_type=jnp.float32)      # (N, 3*inner)

        # 'n (h d) -> h n d' split of q/k/v into one (3H, N, dh) VMEM slab so
        # the scores and attn@v contractions are single head-batched matmuls.
        for h in range(heads):
            lo = h * dim_head
            qkvh_scr[h] = qkv[:, lo:lo + dim_head]
            qkvh_scr[heads + h] = qkv[:, inner + lo:inner + lo + dim_head]
            qkvh_scr[2 * heads + h] = qkv[:, 2 * inner + lo:2 * inner + lo + dim_head]
        qkvh = qkvh_scr[...]                                   # (3H, N, dh) f32
        q = qkvh[:heads].astype(md)
        k = qkvh[heads:2 * heads].astype(md)
        v = qkvh[2 * heads:].astype(md)

        # attention scale is pre-folded into the Q columns of wqkv
        s = jnp.einsum('hnd,hmd->hnm', q, k,
                       preferred_element_type=jnp.float32)     # (H, N, N)
        m = jnp.max(s, axis=-1, keepdims=True)
        e = jnp.exp(s - m)
        p = e * pl.reciprocal(jnp.sum(e, axis=-1, keepdims=True), approx=False)
        oh = jnp.einsum('hnm,hmd->hnd', p.astype(md), v,
                        preferred_element_type=jnp.float32)    # (H, N, dh)
        o = jnp.concatenate([oh[h] for h in range(heads)], axis=-1)  # (N, inner)

        y = jnp.dot(o.astype(md), wout_ref[0],
                    preferred_element_type=jnp.float32) + bout_ref[0]
        x = x + y                                              # residual

        # ------------------------ feed-forward block ------------------------
        xn2 = _layernorm(x, g2_ref[0], be2_ref[0])
        h1 = jnp.dot(xn2.astype(md), w1_ref[0],
                     preferred_element_type=jnp.float32) + b1_ref[0]
        h1 = 0.5 * h1 * (1.0 + jax.lax.erf(h1 * 0.7071067811865476))  # exact GELU
        y2 = jnp.dot(h1.astype(md), w2_ref[0],
                     preferred_element_type=jnp.float32) + b2_ref[0]
        o_ref[0] = x + y2                                      # residual

    return kernel


def transformer_forward(x, kparams, heads, dim_head):
    """x: (B, N, D) f32.  kparams: tuple from prepare_kernel_params (depth-stacked)."""
    B, N, D = x.shape
    depth = kparams[0].shape[0]

    def wspec(arr):
        nd = arr.ndim
        # per-layer weight slab, indexed by the depth grid coordinate
        return pl.BlockSpec((1,) + arr.shape[1:],
                            lambda b, d, _nd=nd: (d,) + (0,) * (_nd - 1))

    kernel = _make_layer_kernel(heads, dim_head)
    return pl.pallas_call(
        kernel,
        out_shape=jax.ShapeDtypeStruct((B, N, D), x.dtype),
        grid=(B, depth),
        in_specs=[pl.BlockSpec((1, N, D), lambda b, d: (b, 0, 0))]
                 + [wspec(a) for a in kparams],
        out_specs=pl.BlockSpec((1, N, D), lambda b, d: (b, 0, 0)),
        scratch_shapes=[pltpu.VMEM((3 * heads, N, dim_head), jnp.float32)],
        compiler_params=pltpu.CompilerParams(
            dimension_semantics=("parallel", "arbitrary")),
    )(x, *kparams)


# --------------------------- parameter handling ---------------------------
def init_params(key, depth, dim, heads, dim_head, mlp_dim):
    """Raw f32 parameters (PyTorch semantics), stacked along a leading depth axis.
    Linear weights are stored pre-transposed as (in_features, out_features)."""
    inner = heads * dim_head
    ks = jax.random.split(key, 11)

    def nrm(k, shape, s=0.02):
        return s * jax.random.normal(k, shape, jnp.float32)

    return {
        "g1": 1.0 + nrm(ks[0], (depth, 1, dim), 0.1),      # LN1 gamma
        "be1": nrm(ks[1], (depth, 1, dim), 0.1),           # LN1 beta
        "wqkv": nrm(ks[2], (depth, dim, 3 * inner)),       # to_qkv (no bias)
        "wout": nrm(ks[3], (depth, inner, dim)),           # to_out weight
        "bout": nrm(ks[4], (depth, 1, dim)),               # to_out bias
        "g2": 1.0 + nrm(ks[5], (depth, 1, dim), 0.1),      # LN2 gamma
        "be2": nrm(ks[6], (depth, 1, dim), 0.1),           # LN2 beta
        "w1": nrm(ks[7], (depth, dim, mlp_dim)),           # FF W1
        "b1": nrm(ks[8], (depth, 1, mlp_dim)),             # FF b1
        "w2": nrm(ks[9], (depth, mlp_dim, dim)),           # FF W2
        "b2": nrm(ks[10], (depth, 1, dim)),                # FF b2
    }


def prepare_kernel_params(params, heads, dim_head):
    """One-time weight transform: fold attention scale into Q columns of wqkv
    and cast matmul weights to bf16 (halves weight DMA bytes / VMEM)."""
    inner = heads * dim_head
    scale = dim_head ** -0.5
    wqkv = params["wqkv"].at[:, :, :inner].multiply(scale)
    return (
        params["g1"], params["be1"],
        wqkv.astype(MATMUL_DTYPE),
        params["wout"].astype(MATMUL_DTYPE),
        params["bout"],
        params["g2"], params["be2"],
        params["w1"].astype(MATMUL_DTYPE),
        params["b1"],
        params["w2"].astype(MATMUL_DTYPE),
        params["b2"],
    )


# --------------------------- reference (pure JAX, f32) ---------------------------
def _ref_forward(x, p, heads, dim_head):
    inner = heads * dim_head
    scale = dim_head ** -0.5
    depth = p["wqkv"].shape[0]
    B, N, D = x.shape
    for d in range(depth):
        xn = _layernorm(x, p["g1"][d], p["be1"][d])
        qkv = xn @ p["wqkv"][d]
        q, k, v = jnp.split(qkv, 3, axis=-1)

        def sh(t):
            return t.reshape(B, N, heads, dim_head).transpose(0, 2, 1, 3)

        qh, kh, vh = sh(q), sh(k), sh(v)
        dots = jnp.einsum("bhnd,bhmd->bhnm", qh, kh) * scale
        attn = jax.nn.softmax(dots, axis=-1)
        o = jnp.einsum("bhnm,bhmd->bhnd", attn, vh)
        o = o.transpose(0, 2, 1, 3).reshape(B, N, inner)
        x = o @ p["wout"][d] + p["bout"][d] + x

        xn = _layernorm(x, p["g2"][d], p["be2"][d])
        h = xn @ p["w1"][d] + p["b1"][d]
        h = 0.5 * h * (1.0 + jax.lax.erf(h / jnp.sqrt(2.0)))
        x = h @ p["w2"][d] + p["b2"][d] + x
    return x


if __name__ == "__main__":
    B, N, DIM = 2, 8, 32
    HEADS, DIM_HEAD = 4, 16
    MLP_DIM, DEPTH = 64, 2

    root = jax.random.PRNGKey(0)
    k_x, k_p = jax.random.split(root)
    x = jax.random.normal(k_x, (B, N, DIM), jnp.float32)

    params = init_params(k_p, DEPTH, DIM, HEADS, DIM_HEAD, MLP_DIM)
    kparams = prepare_kernel_params(params, HEADS, DIM_HEAD)

    out = transformer_forward(x, kparams, HEADS, DIM_HEAD)
    out = jax.block_until_ready(out)

    ref = _ref_forward(x, params, HEADS, DIM_HEAD)
    assert out.shape == (B, N, DIM)
    # bf16 MXU operands with f32 accumulation -> ~1e-3 deviation vs the f32 reference.
    assert jnp.allclose(out, ref, atol=1e-2, rtol=1e-2), "mismatch vs pure-JAX reference"

    print("KERNEL_OK")
</pallas_src>

<mosaic_0001>
module attributes {stable_mosaic.version = 11 : i64} {
  func.func @kernel(%arg0: i32, %arg1: i32, %arg2: memref<1x8x32xf32, #tpu.memory_space<vmem>>, %arg3: memref<1x1x32xf32, #tpu.memory_space<vmem>>, %arg4: memref<1x1x32xf32, #tpu.memory_space<vmem>>, %arg5: memref<1x32x192xbf16, #tpu.memory_space<vmem>>, %arg6: memref<1x64x32xbf16, #tpu.memory_space<vmem>>, %arg7: memref<1x1x32xf32, #tpu.memory_space<vmem>>, %arg8: memref<1x1x32xf32, #tpu.memory_space<vmem>>, %arg9: memref<1x1x32xf32, #tpu.memory_space<vmem>>, %arg10: memref<1x32x64xbf16, #tpu.memory_space<vmem>>, %arg11: memref<1x1x64xf32, #tpu.memory_space<vmem>>, %arg12: memref<1x64x32xbf16, #tpu.memory_space<vmem>>, %arg13: memref<1x1x32xf32, #tpu.memory_space<vmem>>, %arg14: memref<1x8x32xf32, #tpu.memory_space<vmem>>, %arg15: memref<12x8x16xf32, #tpu.memory_space<vmem>>) attributes {dimension_semantics = [#tpu.dimension_semantics<parallel>, #tpu.dimension_semantics<arbitrary>], iteration_bounds = array<i64: 2, 2>, scalar_prefetch = 0 : i64, scratch_operands = 1 : i64, tpu.core_type = #tpu.core_type<tc>, window_params = [{transform_indices = @transform_0, window_bounds = array<i64: 1, 8, 32>}, {transform_indices = @transform_1, window_bounds = array<i64: 1, 1, 32>}, {transform_indices = @transform_2, window_bounds = array<i64: 1, 1, 32>}, {transform_indices = @transform_3, window_bounds = array<i64: 1, 32, 192>}, {transform_indices = @transform_4, window_bounds = array<i64: 1, 64, 32>}, {transform_indices = @transform_5, window_bounds = array<i64: 1, 1, 32>}, {transform_indices = @transform_6, window_bounds = array<i64: 1, 1, 32>}, {transform_indices = @transform_7, window_bounds = array<i64: 1, 1, 32>}, {transform_indices = @transform_8, window_bounds = array<i64: 1, 32, 64>}, {transform_indices = @transform_9, window_bounds = array<i64: 1, 1, 64>}, {transform_indices = @transform_10, window_bounds = array<i64: 1, 64, 32>}, {transform_indices = @transform_11, window_bounds = array<i64: 1, 1, 32>}, {transform_indices = @transform_12, window_bounds = array<i64: 1, 8, 32>}]} {
    %c0_i32 = arith.constant 0 : i32
    %0 = arith.cmpi eq, %arg1, %c0_i32 : i32
    %1 = arith.extui %0 : i1 to i32
    %c0_i32_0 = arith.constant 0 : i32
    %2 = arith.cmpi ne, %1, %c0_i32_0 : i32
    scf.if %2 {
      %c0_87 = arith.constant 0 : index
      %c0_88 = arith.constant 0 : index
      %c0_89 = arith.constant 0 : index
      %175 = vector.load %arg2[%c0_87, %c0_88, %c0_89] : memref<1x8x32xf32, #tpu.memory_space<vmem>>, vector<1x8x32xf32>
      %c0_90 = arith.constant 0 : index
      %c0_91 = arith.constant 0 : index
      %c0_92 = arith.constant 0 : index
      %176 = vector.load %arg14[%c0_90, %c0_91, %c0_92] : memref<1x8x32xf32, #tpu.memory_space<vmem>>, vector<1x8x32xf32>
      tpu.vector_store %arg14[%c0_90, %c0_91, %c0_92], %175 {strides = array<i32>} : memref<1x8x32xf32, #tpu.memory_space<vmem>>, vector<1x8x32xf32>,
    } else {
    }
    %c0 = arith.constant 0 : index
    %c0_1 = arith.constant 0 : index
    %c0_2 = arith.constant 0 : index
    %3 = vector.load %arg14[%c0, %c0_1, %c0_2] : memref<1x8x32xf32, #tpu.memory_space<vmem>>, vector<1x8x32xf32>
    %4 = vector.shape_cast %3 : vector<1x8x32xf32> to vector<8x32xf32>
    %c0_3 = arith.constant 0 : index
    %c0_4 = arith.constant 0 : index
    %c0_5 = arith.constant 0 : index
    %5 = vector.load %arg3[%c0_3, %c0_4, %c0_5] : memref<1x1x32xf32, #tpu.memory_space<vmem>>, vector<1x1x32xf32>
    %6 = vector.shape_cast %5 : vector<1x1x32xf32> to vector<1x32xf32>
    %c0_6 = arith.constant 0 : index
    %c0_7 = arith.constant 0 : index
    %c0_8 = arith.constant 0 : index
    %7 = vector.load %arg4[%c0_6, %c0_7, %c0_8] : memref<1x1x32xf32, #tpu.memory_space<vmem>>, vector<1x1x32xf32>
    %8 = vector.shape_cast %7 : vector<1x1x32xf32> to vector<1x32xf32>
    %cst = arith.constant dense<0.000000e+00> : vector<8xf32>
    %9 = vector.multi_reduction <add>, %4, %cst [1] : vector<8x32xf32> to vector<8xf32>
    %10 = vector.shape_cast %9 : vector<8xf32> to vector<8x1xf32>
    %cst_9 = arith.constant 3.200000e+01 : f32
    %11 = vector.broadcast %cst_9 : f32 to vector<8x1xf32>
    %12 = arith.divf %10, %11 : vector<8x1xf32>
    %13 = vector.broadcast %12 : vector<8x1xf32> to vector<8x32xf32>
    %14 = arith.subf %4, %13 : vector<8x32xf32>
    %15 = arith.mulf %14, %14 : vector<8x32xf32>
    %cst_10 = arith.constant dense<0.000000e+00> : vector<8xf32>
    %16 = vector.multi_reduction <add>, %15, %cst_10 [1] : vector<8x32xf32> to vector<8xf32>
    %17 = vector.shape_cast %16 : vector<8xf32> to vector<8x1xf32>
    %cst_11 = arith.constant 3.200000e+01 : f32
    %18 = vector.broadcast %cst_11 : f32 to vector<8x1xf32>
    %19 = arith.divf %17, %18 : vector<8x1xf32>
    %20 = vector.broadcast %12 : vector<8x1xf32> to vector<8x32xf32>
    %21 = arith.subf %4, %20 : vector<8x32xf32>
    %cst_12 = arith.constant 9.99999974E-6 : f32
    %22 = vector.broadcast %cst_12 : f32 to vector<8x1xf32>
    %23 = arith.addf %19, %22 : vector<8x1xf32>
    %24 = math.rsqrt %23 : vector<8x1xf32>
    %25 = vector.broadcast %24 : vector<8x1xf32> to vector<8x32xf32>
    %26 = arith.mulf %21, %25 : vector<8x32xf32>
    %27 = vector.broadcast %6 : vector<1x32xf32> to vector<8x32xf32>
    %28 = arith.mulf %26, %27 : vector<8x32xf32>
    %29 = vector.broadcast %8 : vector<1x32xf32> to vector<8x32xf32>
    %30 = arith.addf %28, %29 : vector<8x32xf32>
    %31 = arith.truncf %30 : vector<8x32xf32> to vector<8x32xbf16>
    %c0_13 = arith.constant 0 : index
    %c0_14 = arith.constant 0 : index
    %c0_15 = arith.constant 0 : index
    %32 = vector.load %arg5[%c0_13, %c0_14, %c0_15] : memref<1x32x192xbf16, #tpu.memory_space<vmem>>, vector<1x32x192xbf16>
    %33 = vector.shape_cast %32 : vector<1x32x192xbf16> to vector<32x192xbf16>
    %cst_16 = arith.constant dense<0.000000e+00> : vector<8x192xf32>
    %34 = tpu.matmul %31, %33, %cst_16 {dimension_numbers = #tpu.dot_dimension_numbers<[1], [0], [0], [1], [0, 0, 1, 1], [], []>} : vector<8x32xbf16>, vector<32x192xbf16>, vector<8x192xf32> -> vector<8x192xf32>
    %35 = vector.extract_strided_slice %34 {offsets = [0, 0], sizes = [8, 16], strides = [1, 1]} : vector<8x192xf32> to vector<8x16xf32>
    %c0_17 = arith.constant 0 : index
    %c0_18 = arith.constant 0 : index
    %c0_19 = arith.constant 0 : index
    %36 = vector.load %arg15[%c0_17, %c0_18, %c0_19] : memref<12x8x16xf32, #tpu.memory_space<vmem>>, vector<1x8x16xf32>
    %37 = vector.shape_cast %36 : vector<1x8x16xf32> to vector<8x16xf32>
    %38 = vector.shape_cast %35 : vector<8x16xf32> to vector<1x8x16xf32>
    tpu.vector_store %arg15[%c0_17, %c0_18, %c0_19], %38 {strides = array<i32>} : memref<12x8x16xf32, #tpu.memory_space<vmem>>, vector<1x8x16xf32>,
    %39 = vector.extract_strided_slice %34 {offsets = [0, 64], sizes = [8, 16], strides = [1, 1]} : vector<8x192xf32> to vector<8x16xf32>
    %c4 = arith.constant 4 : index
    %c0_20 = arith.constant 0 : index
    %c0_21 = arith.constant 0 : index
    %40 = vector.load %arg15[%c4, %c0_20, %c0_21] : memref<12x8x16xf32, #tpu.memory_space<vmem>>, vector<1x8x16xf32>
    %41 = vector.shape_cast %40 : vector<1x8x16xf32> to vector<8x16xf32>
    %42 = vector.shape_cast %39 : vector<8x16xf32> to vector<1x8x16xf32>
    tpu.vector_store %arg15[%c4, %c0_20, %c0_21], %42 {strides = array<i32>} : memref<12x8x16xf32, #tpu.memory_space<vmem>>, vector<1x8x16xf32>,
    %43 = vector.extract_strided_slice %34 {offsets = [0, 128], sizes = [8, 16], strides = [1, 1]} : vector<8x192xf32> to vector<8x16xf32>
    %c8 = arith.constant 8 : index
    %c0_22 = arith.constant 0 : index
    %c0_23 = arith.constant 0 : index
    %44 = vector.load %arg15[%c8, %c0_22, %c0_23] : memref<12x8x16xf32, #tpu.memory_space<vmem>>, vector<1x8x16xf32>
    %45 = vector.shape_cast %44 : vector<1x8x16xf32> to vector<8x16xf32>
    %46 = vector.shape_cast %43 : vector<8x16xf32> to vector<1x8x16xf32>
    tpu.vector_store %arg15[%c8, %c0_22, %c0_23], %46 {strides = array<i32>} : memref<12x8x16xf32, #tpu.memory_space<vmem>>, vector<1x8x16xf32>,
    %47 = vector.extract_strided_slice %34 {offsets = [0, 16], sizes = [8, 16], strides = [1, 1]} : vector<8x192xf32> to vector<8x16xf32>
    %c1 = arith.constant 1 : index
    %c0_24 = arith.constant 0 : index
    %c0_25 = arith.constant 0 : index
    %48 = vector.load %arg15[%c1, %c0_24, %c0_25] : memref<12x8x16xf32, #tpu.memory_space<vmem>>, vector<1x8x16xf32>
    %49 = vector.shape_cast %48 : vector<1x8x16xf32> to vector<8x16xf32>
    %50 = vector.shape_cast %47 : vector<8x16xf32> to vector<1x8x16xf32>
    tpu.vector_store %arg15[%c1, %c0_24, %c0_25], %50 {strides = array<i32>} : memref<12x8x16xf32, #tpu.memory_space<vmem>>, vector<1x8x16xf32>,
    %51 = vector.extract_strided_slice %34 {offsets = [0, 80], sizes = [8, 16], strides = [1, 1]} : vector<8x192xf32> to vector<8x16xf32>
    %c5 = arith.constant 5 : index
    %c0_26 = arith.constant 0 : index
    %c0_27 = arith.constant 0 : index
    %52 = vector.load %arg15[%c5, %c0_26, %c0_27] : memref<12x8x16xf32, #tpu.memory_space<vmem>>, vector<1x8x16xf32>
    %53 = vector.shape_cast %52 : vector<1x8x16xf32> to vector<8x16xf32>
    %54 = vector.shape_cast %51 : vector<8x16xf32> to vector<1x8x16xf32>
    tpu.vector_store %arg15[%c5, %c0_26, %c0_27], %54 {strides = array<i32>} : memref<12x8x16xf32, #tpu.memory_space<vmem>>, vector<1x8x16xf32>,
    %55 = vector.extract_strided_slice %34 {offsets = [0, 144], sizes = [8, 16], strides = [1, 1]} : vector<8x192xf32> to vector<8x16xf32>
    %c9 = arith.constant 9 : index
    %c0_28 = arith.constant 0 : index
    %c0_29 = arith.constant 0 : index
    %56 = vector.load %arg15[%c9, %c0_28, %c0_29] : memref<12x8x16xf32, #tpu.memory_space<vmem>>, vector<1x8x16xf32>
    %57 = vector.shape_cast %56 : vector<1x8x16xf32> to vector<8x16xf32>
    %58 = vector.shape_cast %55 : vector<8x16xf32> to vector<1x8x16xf32>
    tpu.vector_store %arg15[%c9, %c0_28, %c0_29], %58 {strides = array<i32>} : memref<12x8x16xf32, #tpu.memory_space<vmem>>, vector<1x8x16xf32>,
    %59 = vector.extract_strided_slice %34 {offsets = [0, 32], sizes = [8, 16], strides = [1, 1]} : vector<8x192xf32> to vector<8x16xf32>
    %c2 = arith.constant 2 : index
    %c0_30 = arith.constant 0 : index
    %c0_31 = arith.constant 0 : index
    %60 = vector.load %arg15[%c2, %c0_30, %c0_31] : memref<12x8x16xf32, #tpu.memory_space<vmem>>, vector<1x8x16xf32>
    %61 = vector.shape_cast %60 : vector<1x8x16xf32> to vector<8x16xf32>
    %62 = vector.shape_cast %59 : vector<8x16xf32> to vector<1x8x16xf32>
    tpu.vector_store %arg15[%c2, %c0_30, %c0_31], %62 {strides = array<i32>} : memref<12x8x16xf32, #tpu.memory_space<vmem>>, vector<1x8x16xf32>,
    %63 = vector.extract_strided_slice %34 {offsets = [0, 96], sizes = [8, 16], strides = [1, 1]} : vector<8x192xf32> to vector<8x16xf32>
    %c6 = arith.constant 6 : index
    %c0_32 = arith.constant 0 : index
    %c0_33 = arith.constant 0 : index
    %64 = vector.load %arg15[%c6, %c0_32, %c0_33] : memref<12x8x16xf32, #tpu.memory_space<vmem>>, vector<1x8x16xf32>
    %65 = vector.shape_cast %64 : vector<1x8x16xf32> to vector<8x16xf32>
    %66 = vector.shape_cast %63 : vector<8x16xf32> to vector<1x8x16xf32>
    tpu.vector_store %arg15[%c6, %c0_32, %c0_33], %66 {strides = array<i32>} : memref<12x8x16xf32, #tpu.memory_space<vmem>>, vector<1x8x16xf32>,
    %67 = vector.extract_strided_slice %34 {offsets = [0, 160], sizes = [8, 16], strides = [1, 1]} : vector<8x192xf32> to vector<8x16xf32>
    %c10 = arith.constant 10 : index
    %c0_34 = arith.constant 0 : index
    %c0_35 = arith.constant 0 : index
    %68 = vector.load %arg15[%c10, %c0_34, %c0_35] : memref<12x8x16xf32, #tpu.memory_space<vmem>>, vector<1x8x16xf32>
    %69 = vector.shape_cast %68 : vector<1x8x16xf32> to vector<8x16xf32>
    %70 = vector.shape_cast %67 : vector<8x16xf32> to vector<1x8x16xf32>
    tpu.vector_store %arg15[%c10, %c0_34, %c0_35], %70 {strides = array<i32>} : memref<12x8x16xf32, #tpu.memory_space<vmem>>, vector<1x8x16xf32>,
    %71 = vector.extract_strided_slice %34 {offsets = [0, 48], sizes = [8, 16], strides = [1, 1]} : vector<8x192xf32> to vector<8x16xf32>
    %c3 = arith.constant 3 : index
    %c0_36 = arith.constant 0 : index
    %c0_37 = arith.constant 0 : index
    %72 = vector.load %arg15[%c3, %c0_36, %c0_37] : memref<12x8x16xf32, #tpu.memory_space<vmem>>, vector<1x8x16xf32>
    %73 = vector.shape_cast %72 : vector<1x8x16xf32> to vector<8x16xf32>
    %74 = vector.shape_cast %71 : vector<8x16xf32> to vector<1x8x16xf32>
    tpu.vector_store %arg15[%c3, %c0_36, %c0_37], %74 {strides = array<i32>} : memref<12x8x16xf32, #tpu.memory_space<vmem>>, vector<1x8x16xf32>,
    %75 = vector.extract_strided_slice %34 {offsets = [0, 112], sizes = [8, 16], strides = [1, 1]} : vector<8x192xf32> to vector<8x16xf32>
    %c7 = arith.constant 7 : index
    %c0_38 = arith.constant 0 : index
    %c0_39 = arith.constant 0 : index
    %76 = vector.load %arg15[%c7, %c0_38, %c0_39] : memref<12x8x16xf32, #tpu.memory_space<vmem>>, vector<1x8x16xf32>
    %77 = vector.shape_cast %76 : vector<1x8x16xf32> to vector<8x16xf32>
    %78 = vector.shape_cast %75 : vector<8x16xf32> to vector<1x8x16xf32>
    tpu.vector_store %arg15[%c7, %c0_38, %c0_39], %78 {strides = array<i32>} : memref<12x8x16xf32, #tpu.memory_space<vmem>>, vector<1x8x16xf32>,
    %79 = vector.extract_strided_slice %34 {offsets = [0, 176], sizes = [8, 16], strides = [1, 1]} : vector<8x192xf32> to vector<8x16xf32>
    %c11 = arith.constant 11 : index
    %c0_40 = arith.constant 0 : index
    %c0_41 = arith.constant 0 : index
    %80 = vector.load %arg15[%c11, %c0_40, %c0_41] : memref<12x8x16xf32, #tpu.memory_space<vmem>>, vector<1x8x16xf32>
    %81 = vector.shape_cast %80 : vector<1x8x16xf32> to vector<8x16xf32>
    %82 = vector.shape_cast %79 : vector<8x16xf32> to vector<1x8x16xf32>
    tpu.vector_store %arg15[%c11, %c0_40, %c0_41], %82 {strides = array<i32>} : memref<12x8x16xf32, #tpu.memory_space<vmem>>, vector<1x8x16xf32>,
    %c0_42 = arith.constant 0 : index
    %c0_43 = arith.constant 0 : index
    %c0_44 = arith.constant 0 : index
    %83 = vector.load %arg15[%c0_42, %c0_43, %c0_44] : memref<12x8x16xf32, #tpu.memory_space<vmem>>, vector<12x8x16xf32>
    %84 = vector.extract_strided_slice %83 {offsets = [0, 0, 0], sizes = [4, 8, 16], strides = [1, 1, 1]} : vector<12x8x16xf32> to vector<4x8x16xf32>
    %85 = arith.truncf %84 : vector<4x8x16xf32> to vector<4x8x16xbf16>
    %86 = vector.extract_strided_slice %83 {offsets = [4, 0, 0], sizes = [4, 8, 16], strides = [1, 1, 1]} : vector<12x8x16xf32> to vector<4x8x16xf32>
    %87 = arith.truncf %86 : vector<4x8x16xf32> to vector<4x8x16xbf16>
    %88 = vector.extract_strided_slice %83 {offsets = [8, 0, 0], sizes = [4, 8, 16], strides = [1, 1, 1]} : vector<12x8x16xf32> to vector<4x8x16xf32>
    %89 = arith.truncf %88 : vector<4x8x16xf32> to vector<4x8x16xbf16>
    "tpu.trace_start"() <{level = 10 : i32, message = "hnd,hmd->hnm"}> : () -> ()
    %cst_45 = arith.constant dense<0.000000e+00> : vector<4x8x8xf32>
    %90 = tpu.matmul %85, %87, %cst_45 {dimension_numbers = #tpu.dot_dimension_numbers<[2], [2], [1], [1], [0, 0, 0, 1, 1, 1], [0], [0]>} : vector<4x8x16xbf16>, vector<4x8x16xbf16>, vector<4x8x8xf32> -> vector<4x8x8xf32>
    "tpu.trace_stop"() : () -> ()
    %cst_46 = arith.constant dense<0xFF800000> : vector<4x8xf32>
    %91 = vector.multi_reduction <maximumf>, %90, %cst_46 [2] : vector<4x8x8xf32> to vector<4x8xf32>
    %92 = vector.shape_cast %91 : vector<4x8xf32> to vector<4x8x1xf32>
    %93 = vector.broadcast %92 : vector<4x8x1xf32> to vector<4x8x8xf32>
    %94 = arith.subf %90, %93 : vector<4x8x8xf32>
    %95 = math.exp %94 : vector<4x8x8xf32>
    %cst_47 = arith.constant dense<0.000000e+00> : vector<4x8xf32>
    %96 = vector.multi_reduction <add>, %95, %cst_47 [2] : vector<4x8x8xf32> to vector<4x8xf32>
    %97 = vector.shape_cast %96 : vector<4x8xf32> to vector<4x8x1xf32>
    %98 = tpu.reciprocal %97 : vector<4x8x1xf32> -> vector<4x8x1xf32>
    %99 = vector.broadcast %98 : vector<4x8x1xf32> to vector<4x8x8xf32>
    %100 = arith.mulf %95, %99 : vector<4x8x8xf32>
    %101 = arith.truncf %100 : vector<4x8x8xf32> to vector<4x8x8xbf16>
    "tpu.trace_start"() <{level = 10 : i32, message = "hnm,hmd->hnd"}> : () -> ()
    %cst_48 = arith.constant dense<0.000000e+00> : vector<4x8x16xf32>
    %102 = tpu.matmul %101, %89, %cst_48 {dimension_numbers = #tpu.dot_dimension_numbers<[2], [1], [1], [2], [0, 0, 0, 1, 1, 2], [0], [0]>} : vector<4x8x8xbf16>, vector<4x8x16xbf16>, vector<4x8x16xf32> -> vector<4x8x16xf32>
    "tpu.trace_stop"() : () -> ()
    %103 = vector.extract_strided_slice %102 {offsets = [0, 0, 0], sizes = [1, 8, 16], strides = [1, 1, 1]} : vector<4x8x16xf32> to vector<1x8x16xf32>
    %104 = vector.shape_cast %103 : vector<1x8x16xf32> to vector<8x16xf32>
    %105 = vector.extract_strided_slice %102 {offsets = [1, 0, 0], sizes = [1, 8, 16], strides = [1, 1, 1]} : vector<4x8x16xf32> to vector<1x8x16xf32>
    %106 = vector.shape_cast %105 : vector<1x8x16xf32> to vector<8x16xf32>
    %107 = vector.extract_strided_slice %102 {offsets = [2, 0, 0], sizes = [1, 8, 16], strides = [1, 1, 1]} : vector<4x8x16xf32> to vector<1x8x16xf32>
    %108 = vector.shape_cast %107 : vector<1x8x16xf32> to vector<8x16xf32>
    %109 = vector.extract_strided_slice %102 {offsets = [3, 0, 0], sizes = [1, 8, 16], strides = [1, 1, 1]} : vector<4x8x16xf32> to vector<1x8x16xf32>
    %110 = vector.shape_cast %109 : vector<1x8x16xf32> to vector<8x16xf32>
    %111 = tpu.concatenate %104, %106, %108, %110 in 1 : vector<8x16xf32>, vector<8x16xf32>, vector<8x16xf32>, vector<8x16xf32> -> vector<8x64xf32>
    %112 = arith.truncf %111 : vector<8x64xf32> to vector<8x64xbf16>
    %c0_49 = arith.constant 0 : index
    %c0_50 = arith.constant 0 : index
    %c0_51 = arith.constant 0 : index
    %113 = vector.load %arg6[%c0_49, %c0_50, %c0_51] : memref<1x64x32xbf16, #tpu.memory_space<vmem>>, vector<1x64x32xbf16>
    %114 = vector.shape_cast %113 : vector<1x64x32xbf16> to vector<64x32xbf16>
    %cst_52 = arith.constant dense<0.000000e+00> : vector<8x32xf32>
    %115 = tpu.matmul %112, %114, %cst_52 {dimension_numbers = #tpu.dot_dimension_numbers<[1], [0], [0], [1], [0, 0, 1, 1], [], []>} : vector<8x64xbf16>, vector<64x32xbf16>, vector<8x32xf32> -> vector<8x32xf32>
    %c0_53 = arith.constant 0 : index
    %c0_54 = arith.constant 0 : index
    %c0_55 = arith.constant 0 : index
    %116 = vector.load %arg7[%c0_53, %c0_54, %c0_55] : memref<1x1x32xf32, #tpu.memory_space<vmem>>, vector<1x1x32xf32>
    %117 = vector.shape_cast %116 : vector<1x1x32xf32> to vector<1x32xf32>
    %118 = vector.broadcast %117 : vector<1x32xf32> to vector<8x32xf32>
    %119 = arith.addf %115, %118 : vector<8x32xf32>
    %120 = arith.addf %4, %119 : vector<8x32xf32>
    %c0_56 = arith.constant 0 : index
    %c0_57 = arith.constant 0 : index
    %c0_58 = arith.constant 0 : index
    %121 = vector.load %arg8[%c0_56, %c0_57, %c0_58] : memref<1x1x32xf32, #tpu.memory_space<vmem>>, vector<1x1x32xf32>
    %122 = vector.shape_cast %121 : vector<1x1x32xf32> to vector<1x32xf32>
    %c0_59 = arith.constant 0 : index
    %c0_60 = arith.constant 0 : index
    %c0_61 = arith.constant 0 : index
    %123 = vector.load %arg9[%c0_59, %c0_60, %c0_61] : memref<1x1x32xf32, #tpu.memory_space<vmem>>, vector<1x1x32xf32>
    %124 = vector.shape_cast %123 : vector<1x1x32xf32> to vector<1x32xf32>
    %cst_62 = arith.constant dense<0.000000e+00> : vector<8xf32>
    %125 = vector.multi_reduction <add>, %120, %cst_62 [1] : vector<8x32xf32> to vector<8xf32>
    %126 = vector.shape_cast %125 : vector<8xf32> to vector<8x1xf32>
    %cst_63 = arith.constant 3.200000e+01 : f32
    %127 = vector.broadcast %cst_63 : f32 to vector<8x1xf32>
    %128 = arith.divf %126, %127 : vector<8x1xf32>
    %129 = vector.broadcast %128 : vector<8x1xf32> to vector<8x32xf32>
    %130 = arith.subf %120, %129 : vector<8x32xf32>
    %131 = arith.mulf %130, %130 : vector<8x32xf32>
    %cst_64 = arith.constant dense<0.000000e+00> : vector<8xf32>
    %132 = vector.multi_reduction <add>, %131, %cst_64 [1] : vector<8x32xf32> to vector<8xf32>
    %133 = vector.shape_cast %132 : vector<8xf32> to vector<8x1xf32>
    %cst_65 = arith.constant 3.200000e+01 : f32
    %134 = vector.broadcast %cst_65 : f32 to vector<8x1xf32>
    %135 = arith.divf %133, %134 : vector<8x1xf32>
    %136 = vector.broadcast %128 : vector<8x1xf32> to vector<8x32xf32>
    %137 = arith.subf %120, %136 : vector<8x32xf32>
    %cst_66 = arith.constant 9.99999974E-6 : f32
    %138 = vector.broadcast %cst_66 : f32 to vector<8x1xf32>
    %139 = arith.addf %135, %138 : vector<8x1xf32>
    %140 = math.rsqrt %139 : vector<8x1xf32>
    %141 = vector.broadcast %140 : vector<8x1xf32> to vector<8x32xf32>
    %142 = arith.mulf %137, %141 : vector<8x32xf32>
    %143 = vector.broadcast %122 : vector<1x32xf32> to vector<8x32xf32>
    %144 = arith.mulf %142, %143 : vector<8x32xf32>
    %145 = vector.broadcast %124 : vector<1x32xf32> to vector<8x32xf32>
    %146 = arith.addf %144, %145 : vector<8x32xf32>
    %147 = arith.truncf %146 : vector<8x32xf32> to vector<8x32xbf16>
    %c0_67 = arith.constant 0 : index
    %c0_68 = arith.constant 0 : index
    %c0_69 = arith.constant 0 : index
    %148 = vector.load %arg10[%c0_67, %c0_68, %c0_69] : memref<1x32x64xbf16, #tpu.memory_space<vmem>>, vector<1x32x64xbf16>
    %149 = vector.shape_cast %148 : vector<1x32x64xbf16> to vector<32x64xbf16>
    %cst_70 = arith.constant dense<0.000000e+00> : vector<8x64xf32>
    %150 = tpu.matmul %147, %149, %cst_70 {dimension_numbers = #tpu.dot_dimension_numbers<[1], [0], [0], [1], [0, 0, 1, 1], [], []>} : vector<8x32xbf16>, vector<32x64xbf16>, vector<8x64xf32> -> vector<8x64xf32>
    %c0_71 = arith.constant 0 : index
    %c0_72 = arith.constant 0 : index
    %c0_73 = arith.constant 0 : index
    %151 = vector.load %arg11[%c0_71, %c0_72, %c0_73] : memref<1x1x64xf32, #tpu.memory_space<vmem>>, vector<1x1x64xf32>
    %152 = vector.shape_cast %151 : vector<1x1x64xf32> to vector<1x64xf32>
    %153 = vector.broadcast %152 : vector<1x64xf32> to vector<8x64xf32>
    %154 = arith.addf %150, %153 : vector<8x64xf32>
    %cst_74 = arith.constant 5.000000e-01 : f32
    %155 = vector.broadcast %cst_74 : f32 to vector<8x64xf32>
    %156 = arith.mulf %155, %154 : vector<8x64xf32>
    %cst_75 = arith.constant 0.707106769 : f32
    %157 = vector.broadcast %cst_75 : f32 to vector<8x64xf32>
    %158 = arith.mulf %154, %157 : vector<8x64xf32>
    %159 = math.erf %158 : vector<8x64xf32>
    %cst_76 = arith.constant 1.000000e+00 : f32
    %160 = vector.broadcast %cst_76 : f32 to vector<8x64xf32>
    %161 = arith.addf %160, %159 : vector<8x64xf32>
    %162 = arith.mulf %156, %161 : vector<8x64xf32>
    %163 = arith.truncf %162 : vector<8x64xf32> to vector<8x64xbf16>
    %c0_77 = arith.constant 0 : index
    %c0_78 = arith.constant 0 : index
    %c0_79 = arith.constant 0 : index
    %164 = vector.load %arg12[%c0_77, %c0_78, %c0_79] : memref<1x64x32xbf16, #tpu.memory_space<vmem>>, vector<1x64x32xbf16>
    %165 = vector.shape_cast %164 : vector<1x64x32xbf16> to vector<64x32xbf16>
    %cst_80 = arith.constant dense<0.000000e+00> : vector<8x32xf32>
    %166 = tpu.matmul %163, %165, %cst_80 {dimension_numbers = #tpu.dot_dimension_numbers<[1], [0], [0], [1], [0, 0, 1, 1], [], []>} : vector<8x64xbf16>, vector<64x32xbf16>, vector<8x32xf32> -> vector<8x32xf32>
    %c0_81 = arith.constant 0 : index
    %c0_82 = arith.constant 0 : index
    %c0_83 = arith.constant 0 : index
    %167 = vector.load %arg13[%c0_81, %c0_82, %c0_83] : memref<1x1x32xf32, #tpu.memory_space<vmem>>, vector<1x1x32xf32>
    %168 = vector.shape_cast %167 : vector<1x1x32xf32> to vector<1x32xf32>
    %169 = vector.broadcast %168 : vector<1x32xf32> to vector<8x32xf32>
    %170 = arith.addf %166, %169 : vector<8x32xf32>
    %171 = arith.addf %120, %170 : vector<8x32xf32>
    %c0_84 = arith.constant 0 : index
    %c0_85 = arith.constant 0 : index
    %c0_86 = arith.constant 0 : index
    %172 = vector.load %arg14[%c0_84, %c0_85, %c0_86] : memref<1x8x32xf32, #tpu.memory_space<vmem>>, vector<1x8x32xf32>
    %173 = vector.shape_cast %172 : vector<1x8x32xf32> to vector<8x32xf32>
    %174 = vector.shape_cast %171 : vector<8x32xf32> to vector<1x8x32xf32>
    tpu.vector_store %arg14[%c0_84, %c0_85, %c0_86], %174 {strides = array<i32>} : memref<1x8x32xf32, #tpu.memory_space<vmem>>, vector<1x8x32xf32>,
    return
  }
  func.func @transform_0(%arg0: i32, %arg1: i32) -> (i32, i32, i32) {
    %c0_i32 = arith.constant 0 : i32
    %c0_i32_0 = arith.constant 0 : i32
    %c0_i32_1 = arith.constant 0 : i32
    return %arg0, %c0_i32, %c0_i32_0 : i32, i32, i32
  }
  func.func @transform_1(%arg0: i32, %arg1: i32) -> (i32, i32, i32) {
    %c0_i32 = arith.constant 0 : i32
    %c0_i32_0 = arith.constant 0 : i32
    %c0_i32_1 = arith.constant 0 : i32
    return %arg1, %c0_i32, %c0_i32_0 : i32, i32, i32
  }
  func.func @transform_2(%arg0: i32, %arg1: i32) -> (i32, i32, i32) {
    %c0_i32 = arith.constant 0 : i32
    %c0_i32_0 = arith.constant 0 : i32
    %c0_i32_1 = arith.constant 0 : i32
    return %arg1, %c0_i32, %c0_i32_0 : i32, i32, i32
  }
  func.func @transform_3(%arg0: i32, %arg1: i32) -> (i32, i32, i32) {
    %c0_i32 = arith.constant 0 : i32
    %c0_i32_0 = arith.constant 0 : i32
    %c0_i32_1 = arith.constant 0 : i32
    return %arg1, %c0_i32, %c0_i32_0 : i32, i32, i32
  }
  func.func @transform_4(%arg0: i32, %arg1: i32) -> (i32, i32, i32) {
    %c0_i32 = arith.constant 0 : i32
    %c0_i32_0 = arith.constant 0 : i32
    %c0_i32_1 = arith.constant 0 : i32
    return %arg1, %c0_i32, %c0_i32_0 : i32, i32, i32
  }
  func.func @transform_5(%arg0: i32, %arg1: i32) -> (i32, i32, i32) {
    %c0_i32 = arith.constant 0 : i32
    %c0_i32_0 = arith.constant 0 : i32
    %c0_i32_1 = arith.constant 0 : i32
    return %arg1, %c0_i32, %c0_i32_0 : i32, i32, i32
  }
  func.func @transform_6(%arg0: i32, %arg1: i32) -> (i32, i32, i32) {
    %c0_i32 = arith.constant 0 : i32
    %c0_i32_0 = arith.constant 0 : i32
    %c0_i32_1 = arith.constant 0 : i32
    return %arg1, %c0_i32, %c0_i32_0 : i32, i32, i32
  }
  func.func @transform_7(%arg0: i32, %arg1: i32) -> (i32, i32, i32) {
    %c0_i32 = arith.constant 0 : i32
    %c0_i32_0 = arith.constant 0 : i32
    %c0_i32_1 = arith.constant 0 : i32
    return %arg1, %c0_i32, %c0_i32_0 : i32, i32, i32
  }
  func.func @transform_8(%arg0: i32, %arg1: i32) -> (i32, i32, i32) {
    %c0_i32 = arith.constant 0 : i32
    %c0_i32_0 = arith.constant 0 : i32
    %c0_i32_1 = arith.constant 0 : i32
    return %arg1, %c0_i32, %c0_i32_0 : i32, i32, i32
  }
  func.func @transform_9(%arg0: i32, %arg1: i32) -> (i32, i32, i32) {
    %c0_i32 = arith.constant 0 : i32
    %c0_i32_0 = arith.constant 0 : i32
    %c0_i32_1 = arith.constant 0 : i32
    return %arg1, %c0_i32, %c0_i32_0 : i32, i32, i32
  }
  func.func @transform_10(%arg0: i32, %arg1: i32) -> (i32, i32, i32) {
    %c0_i32 = arith.constant 0 : i32
    %c0_i32_0 = arith.constant 0 : i32
    %c0_i32_1 = arith.constant 0 : i32
    return %arg1, %c0_i32, %c0_i32_0 : i32, i32, i32
  }
  func.func @transform_11(%arg0: i32, %arg1: i32) -> (i32, i32, i32) {
    %c0_i32 = arith.constant 0 : i32
    %c0_i32_0 = arith.constant 0 : i32
    %c0_i32_1 = arith.constant 0 : i32
    return %arg1, %c0_i32, %c0_i32_0 : i32, i32, i32
  }
  func.func @transform_12(%arg0: i32, %arg1: i32) -> (i32, i32, i32) {
    %c0_i32 = arith.constant 0 : i32
    %c0_i32_0 = arith.constant 0 : i32
    %c0_i32_1 = arith.constant 0 : i32
    return %arg0, %c0_i32, %c0_i32_0 : i32, i32, i32
  }
}

</mosaic_0001>

<llo_original>
// kernel: tpu_custom_call.1
$region0: #{tpu_custom_call.1}
  #allocation0 [shape = 'u32[]', space=smem, size = 0x4, offset = 0x4, fixed_abs, tag = 'smem constant byte address 0x4 - core index']
  #allocation1 [shape = 'u32[144,128]{1,0:T(1,128)}', space=vmem, size = 0x12000, scoped, tag = 'internal scratch']
  #allocation2 [shape = 'f32[12,8,16]{2,1,0:T(8,128)}', space=vmem, size = 0xc000, scoped, tag = 'scratch operand']
  %s0 = inlined_call_operand.vmem [shape: f32[2,8,32], index: 0, kind: input, shape index: {}]
  %s1 = inlined_call_operand.vmem [shape: f32[2,1,32], index: 1, kind: input, shape index: {}]
  %s2 = inlined_call_operand.vmem [shape: f32[2,1,32], index: 2, kind: input, shape index: {}]
  %s3 = inlined_call_operand.vmem [shape: bf16[2,32,192], index: 3, kind: input, shape index: {}]
  %s4 = inlined_call_operand.vmem [shape: bf16[2,64,32], index: 4, kind: input, shape index: {}]
  %s5 = inlined_call_operand.vmem [shape: f32[2,1,32], index: 5, kind: input, shape index: {}]
  %s6 = inlined_call_operand.vmem [shape: f32[2,1,32], index: 6, kind: input, shape index: {}]
  %s7 = inlined_call_operand.vmem [shape: f32[2,1,32], index: 7, kind: input, shape index: {}]
  %s8 = inlined_call_operand.vmem [shape: bf16[2,32,64], index: 8, kind: input, shape index: {}]
  %s9 = inlined_call_operand.vmem [shape: f32[2,1,64], index: 9, kind: input, shape index: {}]
  %s10 = inlined_call_operand.vmem [shape: bf16[2,64,32], index: 10, kind: input, shape index: {}]
  %s11 = inlined_call_operand.vmem [shape: f32[2,1,32], index: 11, kind: input, shape index: {}]
  %s12 = inlined_call_operand.hbm [shape: f32[2,8,32], index: 12, kind: output, shape index: {}]
  %s13 = sld [smem:[#allocation0]]
  $region85: #{tpu_custom_call.1} parent=0
    _
  %s15 = ssub.s32 1, %s13
  %s16 = scalar_select 0, %s15, %s13
  $region1: #{tpu_custom_call.1} parent=0
    #allocation3 [shape = 'u8[8192]{0}', space=vmem, size = 0x2000, scoped, tag = 'output window, operand 0']
    #allocation4 [shape = 's32[2]{0}', space=sflag, size = 0x8, scoped, tag = 'scoped memory for tpu_custom_call.1']
    %17 = vsyncpa [#allocation4], 0
    %s18 = scalar_lea.sflag [#allocation4], 1
    %19 = vsyncpa %s18, 0
    loop: start=0, step=1, limit=6
    $region2: #{tpu_custom_call.1} parent=1 // loop_pre_header
      _
    $region3: #{tpu_custom_call.1} parent=1 // loop_header
      %s21 = sphi 0, %s25
      %p22 = scmp.ge.s32.totalorder %s21, 6
      %s28 = sphi 0, %s40
      %s29 = sphi 0, %s36
      %s30 = sphi 0, %s28
      %s31 = sphi 0, %s29
      %s32 = sphi 0, %s30
      %s33 = sphi 0, %s31
      %s43 = sphi 0, %s45
      %s46 = sphi 0, %s43
      %s47 = sphi 0, %s46
      %s63 = sphi 0, %s47
      %s69 = sphi 0, %s71
      %s72 = sphi 0, %s69
      %s73 = sphi 0, %s72
      %s89 = sphi 0, %s73
      %s95 = sphi 0, %s97
      %s98 = sphi 0, %s95
      %s99 = sphi 0, %s98
      %s115 = sphi 0, %s99
      %s121 = sphi 0, %s123
      %s124 = sphi 0, %s121
      %s125 = sphi 0, %s124
      %s141 = sphi 0, %s125
      %s147 = sphi 0, %s149
      %s150 = sphi 0, %s147
      %s151 = sphi 0, %s150
      %s167 = sphi 0, %s151
      %s173 = sphi 0, %s175
      %s176 = sphi 0, %s173
      %s177 = sphi 0, %s176
      %s193 = sphi 0, %s177
      %s199 = sphi 0, %s201
      %s202 = sphi 0, %s199
      %s203 = sphi 0, %s202
      %s219 = sphi 0, %s203
      %s225 = sphi 0, %s227
      %s228 = sphi 0, %s225
      %s229 = sphi 0, %s228
      %s245 = sphi 0, %s229
      %s251 = sphi 0, %s253
      %s254 = sphi 0, %s251
      %s255 = sphi 0, %s254
      %s271 = sphi 0, %s255
      %s277 = sphi 0, %s279
      %s280 = sphi 0, %s277
      %s281 = sphi 0, %s280
      %s297 = sphi 0, %s281
      %s303 = sphi 0, %s305
      %s306 = sphi 0, %s303
      %s307 = sphi 0, %s306
      %s323 = sphi 0, %s307
      %s329 = sphi 0, %s331
      %s332 = sphi 0, %s329
      %s333 = sphi 0, %s332
      %s349 = sphi 0, %s333
      %s355 = sphi 0, %s357
      %s358 = sphi 0, %s355
      %s359 = sphi 0, %s358
      %s375 = sphi 0, %s359
    $region4: #{tpu_custom_call.1} parent=1 // loop_header_branch
      %24 = sbr.rel (%p22) target = $region8
    $region5: #{tpu_custom_call.1} parent=1 // loop_body
      %s26 = ssub.s32 %s21, 1
      %s27 = ssub.s32 %s21, 2
      %s34 = sadd.s32 1, %s29
      %p35 = scmp.ge.s32.totalorder %s34, 2
      %s36 = scalar_select %p35, 0, %s34
      %s37 = sadd.s32 1, %s28
      %s38 = scalar_select %p35, %s37, %s28
      %p39 = scmp.ge.s32.totalorder %s38, 2
      %s40 = scalar_select %p39, 0, %s38
      %s41 = ssub.s32 %s28, %s40
      %p42 = scmp.eq.s32.totalorder %s41, 0
      %s44 = sadd.s32 %s43, 1
      %s45 = scalar_select %p42, %s43, %s44
      %p48 = pneg %p42
      %p49 = scmp.eq.s32.totalorder %s21, 3
      %p50 = por %p48, %p49
      %p51 = scmp.ne.s32.totalorder %s43, %s46
      %p52 = scmp.eq.s32.totalorder %s21, 0
      %p53 = por %p51, %p52
      %p54 = scmp.ne.s32.totalorder %s43, %s46
      %p55 = scmp.eq.s32.totalorder %s26, 3
      %p56 = por %p54, %p55
      %p57 = scmp.ne.s32.totalorder %s46, %s47
      %p58 = scmp.eq.s32.totalorder %s26, 0
      %p59 = por %p57, %p58
      %p60 = scmp.ne.s32.totalorder %s46, %s47
      %p61 = scmp.eq.s32.totalorder %s27, 3
      %p62 = por %p60, %p61
      %p64 = scmp.ne.s32.totalorder %s47, %s63
      %p65 = scmp.eq.s32.totalorder %s27, 0
      %p66 = por %p64, %p65
      %s67 = ssub.s32 %s29, %s36
      %p68 = scmp.eq.s32.totalorder %s67, 0
      %s70 = sadd.s32 %s69, 1
      %s71 = scalar_select %p68, %s69, %s70
      %p74 = pneg %p68
      %p75 = scmp.eq.s32.totalorder %s21, 3
      %p76 = por %p74, %p75
      %p77 = scmp.ne.s32.totalorder %s69, %s72
      %p78 = scmp.eq.s32.totalorder %s21, 0
      %p79 = por %p77, %p78
      %p80 = scmp.ne.s32.totalorder %s69, %s72
      %p81 = scmp.eq.s32.totalorder %s26, 3
      %p82 = por %p80, %p81
      %p83 = scmp.ne.s32.totalorder %s72, %s73
      %p84 = scmp.eq.s32.totalorder %s26, 0
      %p85 = por %p83, %p84
      %p86 = scmp.ne.s32.totalorder %s72, %s73
      %p87 = scmp.eq.s32.totalorder %s27, 3
      %p88 = por %p86, %p87
      %p90 = scmp.ne.s32.totalorder %s73, %s89
      %p91 = scmp.eq.s32.totalorder %s27, 0
      %p92 = por %p90, %p91
      %s93 = ssub.s32 %s29, %s36
      %p94 = scmp.eq.s32.totalorder %s93, 0
      %s96 = sadd.s32 %s95, 1
      %s97 = scalar_select %p94, %s95, %s96
      %p100 = pneg %p94
      %p101 = scmp.eq.s32.totalorder %s21, 3
      %p102 = por %p100, %p101
      %p103 = scmp.ne.s32.totalorder %s95, %s98
      %p104 = scmp.eq.s32.totalorder %s21, 0
      %p105 = por %p103, %p104
      %p106 = scmp.ne.s32.totalorder %s95, %s98
      %p107 = scmp.eq.s32.totalorder %s26, 3
      %p108 = por %p106, %p107
      %p109 = scmp.ne.s32.totalorder %s98, %s99
      %p110 = scmp.eq.s32.totalorder %s26, 0
      %p111 = por %p109, %p110
      %p112 = scmp.ne.s32.totalorder %s98, %s99
      %p113 = scmp.eq.s32.totalorder %s27, 3
      %p114 = por %p112, %p113
      %p116 = scmp.ne.s32.totalorder %s99, %s115
      %p117 = scmp.eq.s32.totalorder %s27, 0
      %p118 = por %p116, %p117
      %s119 = ssub.s32 %s29, %s36
      %p120 = scmp.eq.s32.totalorder %s119, 0
      %s122 = sadd.s32 %s121, 1
      %s123 = scalar_select %p120, %s121, %s122
      %p126 = pneg %p120
      %p127 = scmp.eq.s32.totalorder %s21, 3
      %p128 = por %p126, %p127
      %p129 = scmp.ne.s32.totalorder %s121, %s124
      %p130 = scmp.eq.s32.totalorder %s21, 0
      %p131 = por %p129, %p130
      %p132 = scmp.ne.s32.totalorder %s121, %s124
      %p133 = scmp.eq.s32.totalorder %s26, 3
      %p134 = por %p132, %p133
      %p135 = scmp.ne.s32.totalorder %s124, %s125
      %p136 = scmp.eq.s32.totalorder %s26, 0
      %p137 = por %p135, %p136
      %p138 = scmp.ne.s32.totalorder %s124, %s125
      %p139 = scmp.eq.s32.totalorder %s27, 3
      %p140 = por %p138, %p139
      %p142 = scmp.ne.s32.totalorder %s125, %s141
      %p143 = scmp.eq.s32.totalorder %s27, 0
      %p144 = por %p142, %p143
      %s145 = ssub.s32 %s29, %s36
      %p146 = scmp.eq.s32.totalorder %s145, 0
      %s148 = sadd.s32 %s147, 1
      %s149 = scalar_select %p146, %s147, %s148
      %p152 = pneg %p146
      %p153 = scmp.eq.s32.totalorder %s21, 3
      %p154 = por %p152, %p153
      %p155 = scmp.ne.s32.totalorder %s147, %s150
      %p156 = scmp.eq.s32.totalorder %s21, 0
      %p157 = por %p155, %p156
      %p158 = scmp.ne.s32.totalorder %s147, %s150
      %p159 = scmp.eq.s32.totalorder %s26, 3
      %p160 = por %p158, %p159
      %p161 = scmp.ne.s32.totalorder %s150, %s151
      %p162 = scmp.eq.s32.totalorder %s26, 0
      %p163 = por %p161, %p162
      %p164 = scmp.ne.s32.totalorder %s150, %s151
      %p165 = scmp.eq.s32.totalorder %s27, 3
      %p166 = por %p164, %p165
      %p168 = scmp.ne.s32.totalorder %s151, %s167
      %p169 = scmp.eq.s32.totalorder %s27, 0
      %p170 = por %p168, %p169
      %s171 = ssub.s32 %s29, %s36
      %p172 = scmp.eq.s32.totalorder %s171, 0
      %s174 = sadd.s32 %s173, 1
      %s175 = scalar_select %p172, %s173, %s174
      %p178 = pneg %p172
      %p179 = scmp.eq.s32.totalorder %s21, 3
      %p180 = por %p178, %p179
      %p181 = scmp.ne.s32.totalorder %s173, %s176
      %p182 = scmp.eq.s32.totalorder %s21, 0
      %p183 = por %p181, %p182
      %p184 = scmp.ne.s32.totalorder %s173, %s176
      %p185 = scmp.eq.s32.totalorder %s26, 3
      %p186 = por %p184, %p185
      %p187 = scmp.ne.s32.totalorder %s176, %s177
      %p188 = scmp.eq.s32.totalorder %s26, 0
      %p189 = por %p187, %p188
      %p190 = scmp.ne.s32.totalorder %s176, %s177
      %p191 = scmp.eq.s32.totalorder %s27, 3
      %p192 = por %p190, %p191
      %p194 = scmp.ne.s32.totalorder %s177, %s193
      %p195 = scmp.eq.s32.totalorder %s27, 0
      %p196 = por %p194, %p195
      %s197 = ssub.s32 %s29, %s36
      %p198 = scmp.eq.s32.totalorder %s197, 0
      %s200 = sadd.s32 %s199, 1
      %s201 = scalar_select %p198, %s199, %s200
      %p204 = pneg %p198
      %p205 = scmp.eq.s32.totalorder %s21, 3
      %p206 = por %p204, %p205
      %p207 = scmp.ne.s32.totalorder %s199, %s202
      %p208 = scmp.eq.s32.totalorder %s21, 0
      %p209 = por %p207, %p208
      %p210 = scmp.ne.s32.totalorder %s199, %s202
      %p211 = scmp.eq.s32.totalorder %s26, 3
      %p212 = por %p210, %p211
      %p213 = scmp.ne.s32.totalorder %s202, %s203
      %p214 = scmp.eq.s32.totalorder %s26, 0
      %p215 = por %p213, %p214
      %p216 = scmp.ne.s32.totalorder %s202, %s203
      %p217 = scmp.eq.s32.totalorder %s27, 3
      %p218 = por %p216, %p217
      %p220 = scmp.ne.s32.totalorder %s203, %s219
      %p221 = scmp.eq.s32.totalorder %s27, 0
      %p222 = por %p220, %p221
      %s223 = ssub.s32 %s29, %s36
      %p224 = scmp.eq.s32.totalorder %s223, 0
      %s226 = sadd.s32 %s225, 1
      %s227 = scalar_select %p224, %s225, %s226
      %p230 = pneg %p224
      %p231 = scmp.eq.s32.totalorder %s21, 3
      %p232 = por %p230, %p231
      %p233 = scmp.ne.s32.totalorder %s225, %s228
      %p234 = scmp.eq.s32.totalorder %s21, 0
      %p235 = por %p233, %p234
      %p236 = scmp.ne.s32.totalorder %s225, %s228
      %p237 = scmp.eq.s32.totalorder %s26, 3
      %p238 = por %p236, %p237
      %p239 = scmp.ne.s32.totalorder %s228, %s229
      %p240 = scmp.eq.s32.totalorder %s26, 0
      %p241 = por %p239, %p240
      %p242 = scmp.ne.s32.totalorder %s228, %s229
      %p243 = scmp.eq.s32.totalorder %s27, 3
      %p244 = por %p242, %p243
      %p246 = scmp.ne.s32.totalorder %s229, %s245
      %p247 = scmp.eq.s32.totalorder %s27, 0
      %p248 = por %p246, %p247
      %s249 = ssub.s32 %s29, %s36
      %p250 = scmp.eq.s32.totalorder %s249, 0
      %s252 = sadd.s32 %s251, 1
      %s253 = scalar_select %p250, %s251, %s252
      %p256 = pneg %p250
      %p257 = scmp.eq.s32.totalorder %s21, 3
      %p258 = por %p256, %p257
      %p259 = scmp.ne.s32.totalorder %s251, %s254
      %p260 = scmp.eq.s32.totalorder %s21, 0
      %p261 = por %p259, %p260
      %p262 = scmp.ne.s32.totalorder %s251, %s254
      %p263 = scmp.eq.s32.totalorder %s26, 3
      %p264 = por %p262, %p263
      %p265 = scmp.ne.s32.totalorder %s254, %s255
      %p266 = scmp.eq.s32.totalorder %s26, 0
      %p267 = por %p265, %p266
      %p268 = scmp.ne.s32.totalorder %s254, %s255
      %p269 = scmp.eq.s32.totalorder %s27, 3
      %p270 = por %p268, %p269
      %p272 = scmp.ne.s32.totalorder %s255, %s271
      %p273 = scmp.eq.s32.totalorder %s27, 0
      %p274 = por %p272, %p273
      %s275 = ssub.s32 %s29, %s36
      %p276 = scmp.eq.s32.totalorder %s275, 0
      %s278 = sadd.s32 %s277, 1
      %s279 = scalar_select %p276, %s277, %s278
      %p282 = pneg %p276
      %p283 = scmp.eq.s32.totalorder %s21, 3
      %p284 = por %p282, %p283
      %p285 = scmp.ne.s32.totalorder %s277, %s280
      %p286 = scmp.eq.s32.totalorder %s21, 0
      %p287 = por %p285, %p286
      %p288 = scmp.ne.s32.totalorder %s277, %s280
      %p289 = scmp.eq.s32.totalorder %s26, 3
      %p290 = por %p288, %p289
      %p291 = scmp.ne.s32.totalorder %s280, %s281
      %p292 = scmp.eq.s32.totalorder %s26, 0
      %p293 = por %p291, %p292
      %p294 = scmp.ne.s32.totalorder %s280, %s281
      %p295 = scmp.eq.s32.totalorder %s27, 3
      %p296 = por %p294, %p295
      %p298 = scmp.ne.s32.totalorder %s281, %s297
      %p299 = scmp.eq.s32.totalorder %s27, 0
      %p300 = por %p298, %p299
      %s301 = ssub.s32 %s29, %s36
      %p302 = scmp.eq.s32.totalorder %s301, 0
      %s304 = sadd.s32 %s303, 1
      %s305 = scalar_select %p302, %s303, %s304
      %p308 = pneg %p302
      %p309 = scmp.eq.s32.totalorder %s21, 3
      %p310 = por %p308, %p309
      %p311 = scmp.ne.s32.totalorder %s303, %s306
      %p312 = scmp.eq.s32.totalorder %s21, 0
      %p313 = por %p311, %p312
      %p314 = scmp.ne.s32.totalorder %s303, %s306
      %p315 = scmp.eq.s32.totalorder %s26, 3
      %p316 = por %p314, %p315
      %p317 = scmp.ne.s32.totalorder %s306, %s307
      %p318 = scmp.eq.s32.totalorder %s26, 0
      %p319 = por %p317, %p318
      %p320 = scmp.ne.s32.totalorder %s306, %s307
      %p321 = scmp.eq.s32.totalorder %s27, 3
      %p322 = por %p320, %p321
      %p324 = scmp.ne.s32.totalorder %s307, %s323
      %p325 = scmp.eq.s32.totalorder %s27, 0
      %p326 = por %p324, %p325
      %s327 = ssub.s32 %s29, %s36
      %p328 = scmp.eq.s32.totalorder %s327, 0
      %s330 = sadd.s32 %s329, 1
      %s331 = scalar_select %p328, %s329, %s330
      %p334 = pneg %p328
      %p335 = scmp.eq.s32.totalorder %s21, 3
      %p336 = por %p334, %p335
      %p337 = scmp.ne.s32.totalorder %s329, %s332
      %p338 = scmp.eq.s32.totalorder %s21, 0
      %p339 = por %p337, %p338
      %p340 = scmp.ne.s32.totalorder %s329, %s332
      %p341 = scmp.eq.s32.totalorder %s26, 3
      %p342 = por %p340, %p341
      %p343 = scmp.ne.s32.totalorder %s332, %s333
      %p344 = scmp.eq.s32.totalorder %s26, 0
      %p345 = por %p343, %p344
      %p346 = scmp.ne.s32.totalorder %s332, %s333
      %p347 = scmp.eq.s32.totalorder %s27, 3
      %p348 = por %p346, %p347
      %p350 = scmp.ne.s32.totalorder %s333, %s349
      %p351 = scmp.eq.s32.totalorder %s27, 0
      %p352 = por %p350, %p351
      %s353 = ssub.s32 %s28, %s40
      %p354 = scmp.eq.s32.totalorder %s353, 0
      %s356 = sadd.s32 %s355, 1
      %s357 = scalar_select %p354, %s355, %s356
      %p360 = pneg %p354
      %p361 = scmp.eq.s32.totalorder %s21, 3
      %p362 = por %p360, %p361
      %p363 = scmp.ne.s32.totalorder %s355, %s358
      %p364 = scmp.eq.s32.totalorder %s21, 0
      %p365 = por %p363, %p364
      %p366 = scmp.ne.s32.totalorder %s355, %s358
      %p367 = scmp.eq.s32.totalorder %s26, 3
      %p368 = por %p366, %p367
      %p369 = scmp.ne.s32.totalorder %s358, %s359
      %p370 = scmp.eq.s32.totalorder %s26, 0
      %p371 = por %p369, %p370
      %p372 = scmp.ne.s32.totalorder %s358, %s359
      %p373 = scmp.eq.s32.totalorder %s27, 3
      %p374 = por %p372, %p373
      %p376 = scmp.ne.s32.totalorder %s359, %s375
      %p377 = scmp.eq.s32.totalorder %s27, 0
      %p378 = por %p376, %p377
      %p379 = scmp.le.s32.totalorder 1, %s21
      %p380 = scmp.lt.s32.totalorder %s21, 5
      %p381 = pnand %p379, %p380
      %p382 = pneg %p381
      // Predicated region
      $region9: #{tpu_custom_call.1} parent=5 // pred_check
        _
      $region10: #{tpu_custom_call.1} parent=5 // pred_check_branch
        %384 = sbr.rel (%p381) target = $region12
      $region11: #{tpu_custom_call.1} parent=5 // pred_region
        %s385 = ssub.s32 %s21, 1
      $region12: #{tpu_custom_call.1} parent=5 // pred_fallthru
        _
      %p386 = scmp.lt.s32.totalorder %s21, 4
      // Predicated region
      $region13: #{tpu_custom_call.1} parent=5 // pred_check
        %p387 = pneg %p386
      $region14: #{tpu_custom_call.1} parent=5 // pred_check_branch
        %389 = sbr.rel (%p387) target = $region16
      $region15: #{tpu_custom_call.1} parent=5 // pred_region
        // Predicated region
        $region17: #{tpu_custom_call.1} parent=15 // pred_check
          %p390 = pneg %p53
        $region18: #{tpu_custom_call.1} parent=15 // pred_check_branch
          %392 = sbr.rel (%p390) target = $region20
        $region19: #{tpu_custom_call.1} parent=15 // pred_region
          %p393 = scmp.lt.s32.totalorder %s28, 1
          %s394 = scalar_select %p393, %s28, 1
          %s395 = smul.addr %s394, 8
          %s396 = scalar_lea.vmem %s0, %s395
        $region20: #{tpu_custom_call.1} parent=15 // pred_fallthru
          _
        // Predicated region
        $region21: #{tpu_custom_call.1} parent=15 // pred_check
          %p397 = pneg %p79
        $region22: #{tpu_custom_call.1} parent=15 // pred_check_branch
          %399 = sbr.rel (%p397) target = $region24
        $region23: #{tpu_custom_call.1} parent=15 // pred_region
          %p400 = scmp.lt.s32.totalorder %s29, 1
          %s401 = scalar_select %p400, %s29, 1
          %s402 = scalar_lea.vmem %s1, %s401
        $region24: #{tpu_custom_call.1} parent=15 // pred_fallthru
          _
        // Predicated region
        $region25: #{tpu_custom_call.1} parent=15 // pred_check
          %p403 = pneg %p105
        $region26: #{tpu_custom_call.1} parent=15 // pred_check_branch
          %405 = sbr.rel (%p403) target = $region28
        $region27: #{tpu_custom_call.1} parent=15 // pred_region
          %p406 = scmp.lt.s32.totalorder %s29, 1
          %s407 = scalar_select %p406, %s29, 1
          %s408 = scalar_lea.vmem %s2, %s407
        $region28: #{tpu_custom_call.1} parent=15 // pred_fallthru
          _
        // Predicated region
        $region29: #{tpu_custom_call.1} parent=15 // pred_check
          %p409 = pneg %p131
        $region30: #{tpu_custom_call.1} parent=15 // pred_check_branch
          %411 = sbr.rel (%p409) target = $region32
        $region31: #{tpu_custom_call.1} parent=15 // pred_region
          %p412 = scmp.lt.s32.totalorder %s29, 1
          %s413 = scalar_select %p412, %s29, 1
          %s414 = smul.addr %s413, 8
          %s415 = smul.addr %s414, 4
          %s416 = scalar_lea.vmem %s3, %s415
        $region32: #{tpu_custom_call.1} parent=15 // pred_fallthru
          _
        // Predicated region
        $region33: #{tpu_custom_call.1} parent=15 // pred_check
          %p417 = pneg %p157
        $region34: #{tpu_custom_call.1} parent=15 // pred_check_branch
          %419 = sbr.rel (%p417) target = $region36
        $region35: #{tpu_custom_call.1} parent=15 // pred_region
          %p420 = scmp.lt.s32.totalorder %s29, 1
          %s421 = scalar_select %p420, %s29, 1
          %s422 = smul.addr %s421, 8
          %s423 = smul.addr %s422, 4
          %s424 = scalar_lea.vmem %s4, %s423
        $region36: #{tpu_custom_call.1} parent=15 // pred_fallthru
          _
        // Predicated region
        $region37: #{tpu_custom_call.1} parent=15 // pred_check
          %p425 = pneg %p183
        $region38: #{tpu_custom_call.1} parent=15 // pred_check_branch
          %427 = sbr.rel (%p425) target = $region40
        $region39: #{tpu_custom_call.1} parent=15 // pred_region
          %p428 = scmp.lt.s32.totalorder %s29, 1
          %s429 = scalar_select %p428, %s29, 1
          %s430 = scalar_lea.vmem %s5, %s429
        $region40: #{tpu_custom_call.1} parent=15 // pred_fallthru
          _
        // Predicated region
        $region41: #{tpu_custom_call.1} parent=15 // pred_check
          %p431 = pneg %p209
        $region42: #{tpu_custom_call.1} parent=15 // pred_check_branch
          %433 = sbr.rel (%p431) target = $region44
        $region43: #{tpu_custom_call.1} parent=15 // pred_region
          %p434 = scmp.lt.s32.totalorder %s29, 1
          %s435 = scalar_select %p434, %s29, 1
          %s436 = scalar_lea.vmem %s6, %s435
        $region44: #{tpu_custom_call.1} parent=15 // pred_fallthru
          _
        // Predicated region
        $region45: #{tpu_custom_call.1} parent=15 // pred_check
          %p437 = pneg %p235
        $region46: #{tpu_custom_call.1} parent=15 // pred_check_branch
          %439 = sbr.rel (%p437) target = $region48
        $region47: #{tpu_custom_call.1} parent=15 // pred_region
          %p440 = scmp.lt.s32.totalorder %s29, 1
          %s441 = scalar_select %p440, %s29, 1
          %s442 = scalar_lea.vmem %s7, %s441
        $region48: #{tpu_custom_call.1} parent=15 // pred_fallthru
          _
        // Predicated region
        $region49: #{tpu_custom_call.1} parent=15 // pred_check
          %p443 = pneg %p261
        $region50: #{tpu_custom_call.1} parent=15 // pred_check_branch
          %445 = sbr.rel (%p443) target = $region52
        $region51: #{tpu_custom_call.1} parent=15 // pred_region
          %p446 = scmp.lt.s32.totalorder %s29, 1
          %s447 = scalar_select %p446, %s29, 1
          %s448 = smul.addr %s447, 4
          %s449 = smul.addr %s448, 4
          %s450 = scalar_lea.vmem %s8, %s449
        $region52: #{tpu_custom_call.1} parent=15 // pred_fallthru
          _
        // Predicated region
        $region53: #{tpu_custom_call.1} parent=15 // pred_check
          %p451 = pneg %p287
        $region54: #{tpu_custom_call.1} parent=15 // pred_check_branch
          %453 = sbr.rel (%p451) target = $region56
        $region55: #{tpu_custom_call.1} parent=15 // pred_region
          %p454 = scmp.lt.s32.totalorder %s29, 1
          %s455 = scalar_select %p454, %s29, 1
          %s456 = scalar_lea.vmem %s9, %s455
        $region56: #{tpu_custom_call.1} parent=15 // pred_fallthru
          _
        // Predicated region
        $region57: #{tpu_custom_call.1} parent=15 // pred_check
          %p457 = pneg %p313
        $region58: #{tpu_custom_call.1} parent=15 // pred_check_branch
          %459 = sbr.rel (%p457) target = $region60
        $region59: #{tpu_custom_call.1} parent=15 // pred_region
          %p460 = scmp.lt.s32.totalorder %s29, 1
          %s461 = scalar_select %p460, %s29, 1
          %s462 = smul.addr %s461, 8
          %s463 = smul.addr %s462, 4
          %s464 = scalar_lea.vmem %s10, %s463
        $region60: #{tpu_custom_call.1} parent=15 // pred_fallthru
          _
        // Predicated region
        $region61: #{tpu_custom_call.1} parent=15 // pred_check
          %p465 = pneg %p339
        $region62: #{tpu_custom_call.1} parent=15 // pred_check_branch
          %467 = sbr.rel (%p465) target = $region64
        $region63: #{tpu_custom_call.1} parent=15 // pred_region
          %p468 = scmp.lt.s32.totalorder %s29, 1
          %s469 = scalar_select %p468, %s29, 1
          %s470 = scalar_lea.vmem %s11, %s469
        $region64: #{tpu_custom_call.1} parent=15 // pred_fallthru
          _
      $region16: #{tpu_custom_call.1} parent=5 // pred_fallthru
        _
      %p471 = scmp.le.s32.totalorder 1, %s21
      %p472 = scmp.lt.s32.totalorder %s21, 5
      %p473 = pnand %p471, %p472
      %p474 = pneg %p473
      // Predicated region
      $region65: #{tpu_custom_call.1} parent=5 // pred_check
        _
      $region66: #{tpu_custom_call.1} parent=5 // pred_check_branch
        %476 = sbr.rel (%p473) target = $region68
      $region67: #{tpu_custom_call.1} parent=5 // pred_region
        %s477 = ssub.s32 %s21, 1
        %p478 = scmp.lt.s32.totalorder %s30, 1
        %s479 = scalar_select %p478, %s30, 1
        %s480 = smul.addr %s479, 8
        %s481 = scalar_lea.vmem %s0, %s480
        %p482 = pneg %p59
        %p483 = pneg %p56
        %p484 = scmp.lt.s32.totalorder %s31, 1
        %s485 = scalar_select %p484, %s31, 1
        %s486 = scalar_lea.vmem %s1, %s485
        %p487 = pneg %p85
        %p488 = pneg %p82
        %p489 = scmp.lt.s32.totalorder %s31, 1
        %s490 = scalar_select %p489, %s31, 1
        %s491 = scalar_lea.vmem %s2, %s490
        %p492 = pneg %p111
        %p493 = pneg %p108
        %p494 = scmp.lt.s32.totalorder %s31, 1
        %s495 = scalar_select %p494, %s31, 1
        %s496 = smul.addr %s495, 8
        %s497 = smul.addr %s496, 4
        %s498 = scalar_lea.vmem %s3, %s497
        %p499 = pneg %p137
        %p500 = pneg %p134
        %p501 = scmp.lt.s32.totalorder %s31, 1
        %s502 = scalar_select %p501, %s31, 1
        %s503 = smul.addr %s502, 8
        %s504 = smul.addr %s503, 4
        %s505 = scalar_lea.vmem %s4, %s504
        %p506 = pneg %p163
        %p507 = pneg %p160
        %p508 = scmp.lt.s32.totalorder %s31, 1
        %s509 = scalar_select %p508, %s31, 1
        %s510 = scalar_lea.vmem %s5, %s509
        %p511 = pneg %p189
        %p512 = pneg %p186
        %p513 = scmp.lt.s32.totalorder %s31, 1
        %s514 = scalar_select %p513, %s31, 1
        %s515 = scalar_lea.vmem %s6, %s514
        %p516 = pneg %p215
        %p517 = pneg %p212
        %p518 = scmp.lt.s32.totalorder %s31, 1
        %s519 = scalar_select %p518, %s31, 1
        %s520 = scalar_lea.vmem %s7, %s519
        %p521 = pneg %p241
        %p522 = pneg %p238
        %p523 = scmp.lt.s32.totalorder %s31, 1
        %s524 = scalar_select %p523, %s31, 1
        %s525 = smul.addr %s524, 4
        %s526 = smul.addr %s525, 4
        %s527 = scalar_lea.vmem %s8, %s526
        %p528 = pneg %p267
        %p529 = pneg %p264
        %p530 = scmp.lt.s32.totalorder %s31, 1
        %s531 = scalar_select %p530, %s31, 1
        %s532 = scalar_lea.vmem %s9, %s531
        %p533 = pneg %p293
        %p534 = pneg %p290
        %p535 = scmp.lt.s32.totalorder %s31, 1
        %s536 = scalar_select %p535, %s31, 1
        %s537 = smul.addr %s536, 8
        %s538 = smul.addr %s537, 4
        %s539 = scalar_lea.vmem %s10, %s538
        %p540 = pneg %p319
        %p541 = pneg %p316
        %p542 = scmp.lt.s32.totalorder %s31, 1
        %s543 = scalar_select %p542, %s31, 1
        %s544 = scalar_lea.vmem %s11, %s543
        %p545 = pneg %p345
        %p546 = pneg %p342
        %p547 = pneg %p371
        %p548 = pneg %p368
        %s549 = sand.u32 %s358, 1
        %s550 = scalar_lea.sflag [#allocation4], %s549
        %s551 = sand.u32 %s358, 1
        %s552 = smul.addr %s551, 8
        %s553 = scalar_lea.vmem [#allocation3], %s552
        %p554 = scmp.lt.s32.totalorder %s30, 1
        %s555 = scalar_select %p554, %s30, 1
        %s556 = smul.addr %s555, 8
        %s557 = scalar_lea.vmem %s0, %s556
        %p558 = scmp.lt.s32.totalorder %s31, 1
        %s559 = scalar_select %p558, %s31, 1
        %s560 = scalar_lea.vmem %s1, %s559
        %p561 = scmp.lt.s32.totalorder %s31, 1
        %s562 = scalar_select %p561, %s31, 1
        %s563 = scalar_lea.vmem %s2, %s562
        %p564 = scmp.lt.s32.totalorder %s31, 1
        %s565 = scalar_select %p564, %s31, 1
        %s566 = smul.addr %s565, 8
        %s567 = smul.addr %s566, 4
        %s568 = scalar_lea.vmem %s3, %s567
        %p569 = scmp.lt.s32.totalorder %s31, 1
        %s570 = scalar_select %p569, %s31, 1
        %s571 = smul.addr %s570, 8
        %s572 = smul.addr %s571, 4
        %s573 = scalar_lea.vmem %s4, %s572
        %p574 = scmp.lt.s32.totalorder %s31, 1
        %s575 = scalar_select %p574, %s31, 1
        %s576 = scalar_lea.vmem %s5, %s575
        %p577 = scmp.lt.s32.totalorder %s31, 1
        %s578 = scalar_select %p577, %s31, 1
        %s579 = scalar_lea.vmem %s6, %s578
        %p580 = scmp.lt.s32.totalorder %s31, 1
        %s581 = scalar_select %p580, %s31, 1
        %s582 = scalar_lea.vmem %s7, %s581
        %p583 = scmp.lt.s32.totalorder %s31, 1
        %s584 = scalar_select %p583, %s31, 1
        %s585 = smul.addr %s584, 4
        %s586 = smul.addr %s585, 4
        %s587 = scalar_lea.vmem %s8, %s586
        %p588 = scmp.lt.s32.totalorder %s31, 1
        %s589 = scalar_select %p588, %s31, 1
        %s590 = scalar_lea.vmem %s9, %s589
        %p591 = scmp.lt.s32.totalorder %s31, 1
        %s592 = scalar_select %p591, %s31, 1
        %s593 = smul.addr %s592, 8
        %s594 = smul.addr %s593, 4
        %s595 = scalar_lea.vmem %s10, %s594
        %p596 = scmp.lt.s32.totalorder %s31, 1
        %s597 = scalar_select %p596, %s31, 1
        %s598 = scalar_lea.vmem %s11, %s597
        %p600 = scmp.eq.s32.totalorder %s31, 0
        // Predicated region
        $region69: #{tpu_custom_call.1} parent=67 // pred_check
          %p601 = pneg %p600
        $region70: #{tpu_custom_call.1} parent=67 // pred_check_branch
          %603 = sbr.rel (%p601) target = $region72
        $region71: #{tpu_custom_call.1} parent=67 // pred_region
          %v604 = vld [vmem:[%s557] sm:$0xff]
          %vm605 = vcmask 261120
          %606 = vst.msk [vmem:[%s553] sm:$0xff] %vm605, %v604
        $region72: #{tpu_custom_call.1} parent=67 // pred_fallthru
          _
        %v607 = vld [vmem:[%s553] sm:$0xff]
        %v608 = vld [vmem:[%s560] sm:$0x1]
        %v609 = vld [vmem:[%s563] sm:$0x1]
        %vm610 = vcmask 261120
        %v611 = vsel %vm610, %v607, 0.0
        %612 = vadd.xlane.f32.xlu0 %v611
        %v613 = vpop.xlane.xlu0 %612
        %v614 = vrcp.pop 32.0
        %v615 = vmul.f32 %v613, %v614
        %v616 = vsub.f32 %v607, %v615
        %v617 = vmul.f32 %v616, %v616
        %v618 = vsel %vm610, %v617, 0.0
        %619 = vadd.xlane.f32.xlu0 %v618
        %v620 = vpop.xlane.xlu0 %619
        %v621 = vmul.f32 %v620, %v614
        %v622 = vadd.f32 %v621, 1e-05
        %v623 = vrsqrt.pop %v622
        %v624 = vmul.f32 %v616, %v623
        %v626 = vlaneseq
        %v627 = vshrl.u32 %v626, 7
        %v628 = vsub.s32 0, %v627
        %v629 = vrot.slane %v608, %v628
        %v631 = vmul.f32 %v624, %v629
        %v633 = vlaneseq
        %v634 = vshrl.u32 %v633, 7
        %v635 = vsub.s32 0, %v634
        %v636 = vrot.slane %v609, %v635
        %v638 = vadd.f32 %v631, %v636
        %v639 = vpack.c.bf16 %v638, %v638
        %v640 = vld [vmem:[%s568] sm:$0xff]
        %v641 = vld [vmem:[%s568 + $0x8] sm:$0xff]
        %v642 = vld [vmem:[%s568 + $0x10] sm:$0xff]
        %v643 = vld [vmem:[%s568 + $0x18] sm:$0xff]
        %v648 = vunpack.c.l.b16 %v640
        %v649 = vunpack.c.h.b16 %v640
        %v650 = vunpack.c.l.b16 %v641
        %v651 = vunpack.c.h.b16 %v641
        %v652 = vunpack.c.l.b16 %v642
        %v653 = vunpack.c.h.b16 %v642
        %v654 = vunpack.c.l.b16 %v643
        %v655 = vunpack.c.h.b16 %v643
        %v656 = vpack.c.b16 %v650, %v648
        %v657 = vpack.c.b16 %v651, %v649
        %v658 = vpack.c.b16 %v654, %v652
        %v659 = vpack.c.b16 %v655, %v653
        %v665 = vsel %vm610, %v639, 0
        %667 = vmatprep.subr.bf16.mxu0 %v657
        %668 = vmatpush1.bf16.msra.mxu0 %v656
        %669 = vmatprep.subr.bf16.mxu0 %v659
        %670 = vmatpush1.bf16.msra.mxu0 %v658
        %671 = vmatprep.subr.bf16.mxu0 0
        %672 = vmatpush1.bf16.msra.mxu0 0
        %673 = vmatprep.subr.bf16.mxu0 0
        %674 = vmatpush1.bf16.msra.mxu0 0
        %675 = vmatprep.subr.bf16.mxu0 0
        %676 = vmatpush1.bf16.msra.mxu0 0
        %677 = vmatprep.subr.bf16.mxu0 0
        %678 = vmatpush1.bf16.msra.mxu0 0
        %679 = vmatprep.subr.bf16.mxu0 0
        %680 = vmatpush1.bf16.msra.mxu0 0
        %681 = vmatprep.subr.bf16.mxu0 0
        %682 = vmatpush1.bf16.msra.mxu0 0
        %683 = vmatprep.subr.bf16.mxu0 0
        %684 = vmatpush1.bf16.msra.mxu0 0
        %685 = vmatprep.subr.bf16.mxu0 0
        %686 = vmatpush1.bf16.msra.mxu0 0
        %687 = vmatprep.subr.bf16.mxu0 0
        %688 = vmatpush1.bf16.msra.mxu0 0
        %689 = vmatprep.subr.bf16.mxu0 0
        %690 = vmatpush1.bf16.msra.mxu0 0
        %691 = vmatprep.subr.bf16.mxu0 0
        %692 = vmatpush1.bf16.msra.mxu0 0
        %693 = vmatprep.subr.bf16.mxu0 0
        %694 = vmatpush1.bf16.msra.mxu0 0
        %695 = vmatprep.subr.bf16.mxu0 0
        %696 = vmatpush1.bf16.msra.mxu0 0
        %697 = vmatprep.subr.bf16.mxu0 0
        %698 = vmatpush1.bf16.msra.mxu0 0
        %699 = vmatprep.mubr.bf16.mxu0 0
        %700 = vmatmul.mubr.bf16.gmra.mrb[0].mxu0 %v665
        %v701 = vpop.f32.mrb[0].mxu0
        %v702 = vadd.f32 0.0, %v701
        %v703 = vpop.f32.mrb[0].mxu0
        %v704 = vadd.f32 0.0, %v703
        %v705 = vpop.f32.mrb[0].mxu0
        %v706 = vpop.f32.mrb[0].mxu0
        %707 = vdwg.mxu0
        %vm708 = vcmask 130048
        %709 = vst.msk [vmem:[#allocation2] sm:$0xff] %vm708, %v702
        %711 = vrot.lane.b32.xlu0 %v702, 64
        %v712 = vpop.permute.xlu0 %711
        %s714 = scalar_lea.vmem [#allocation2], 32
        %715 = vst.msk [vmem:[%s714] sm:$0xff] %vm708, %v712
        %s716 = scalar_lea.vmem [#allocation2], 64
        %717 = vst.msk [vmem:[%s716] sm:$0xff] %vm708, %v704
        %718 = vrot.lane.b32.xlu0 %v702, 112
        %v719 = vpop.permute.xlu0 %718
        %s721 = scalar_lea.vmem [#allocation2], 8
        %722 = vst.msk [vmem:[%s721] sm:$0xff] %vm708, %v719
        %723 = vrot.lane.b32.xlu0 %v702, 48
        %v724 = vpop.permute.xlu0 %723
        %s726 = scalar_lea.vmem [#allocation2], 40
        %727 = vst.msk [vmem:[%s726] sm:$0xff] %vm708, %v724
        %729 = vrot.lane.b32.xlu0 %v704, 112
        %v730 = vpop.permute.xlu0 %729
        %s732 = scalar_lea.vmem [#allocation2], 72
        %733 = vst.msk [vmem:[%s732] sm:$0xff] %vm708, %v730
        %734 = vrot.lane.b32.xlu0 %v702, 96
        %v735 = vpop.permute.xlu0 %734
        %s737 = scalar_lea.vmem [#allocation2], 16
        %738 = vst.msk [vmem:[%s737] sm:$0xff] %vm708, %v735
        %739 = vrot.lane.b32.xlu0 %v702, 32
        %v740 = vpop.permute.xlu0 %739
        %s742 = scalar_lea.vmem [#allocation2], 48
        %743 = vst.msk [vmem:[%s742] sm:$0xff] %vm708, %v740
        %744 = vrot.lane.b32.xlu0 %v704, 96
        %v745 = vpop.permute.xlu0 %744
        %s747 = scalar_lea.vmem [#allocation2], 80
        %748 = vst.msk [vmem:[%s747] sm:$0xff] %vm708, %v745
        %749 = vrot.lane.b32.xlu0 %v702, 80
        %v750 = vpop.permute.xlu0 %749
        %s752 = scalar_lea.vmem [#allocation2], 24
        %753 = vst.msk [vmem:[%s752] sm:$0xff] %vm708, %v750
        %754 = vrot.lane.b32.xlu0 %v702, 16
        %v755 = vpop.permute.xlu0 %754
        %s757 = scalar_lea.vmem [#allocation2], 56
        %758 = vst.msk [vmem:[%s757] sm:$0xff] %vm708, %v755
        %759 = vrot.lane.b32.xlu0 %v704, 80
        %v760 = vpop.permute.xlu0 %759
        %s762 = scalar_lea.vmem [#allocation2], 88
        %763 = vst.msk [vmem:[%s762] sm:$0xff] %vm708, %v760
        %v764 = vld [vmem:[#allocation2] sm:$0xff]
        %v765 = vld [vmem:[#allocation2 + $0x8] sm:$0xff]
        %v766 = vld [vmem:[#allocation2 + $0x10] sm:$0xff]
        %v767 = vld [vmem:[#allocation2 + $0x18] sm:$0xff]
        %v768 = vld [vmem:[#allocation2 + $0x20] sm:$0xff]
        %v769 = vld [vmem:[#allocation2 + $0x28] sm:$0xff]
        %v770 = vld [vmem:[#allocation2 + $0x30] sm:$0xff]
        %v771 = vld [vmem:[#allocation2 + $0x38] sm:$0xff]
        %v772 = vld [vmem:[#allocation2 + $0x40] sm:$0xff]
        %v773 = vld [vmem:[#allocation2 + $0x48] sm:$0xff]
        %v774 = vld [vmem:[#allocation2 + $0x50] sm:$0xff]
        %v775 = vld [vmem:[#allocation2 + $0x58] sm:$0xff]
        %v776 = vpack.c.bf16 %v764, %v764
        %v777 = vpack.c.bf16 %v765, %v765
        %v778 = vpack.c.bf16 %v766, %v766
        %v779 = vpack.c.bf16 %v767, %v767
        %v780 = vpack.c.bf16 %v768, %v768
        %v781 = vpack.c.bf16 %v769, %v769
        %v782 = vpack.c.bf16 %v770, %v770
        %v783 = vpack.c.bf16 %v771, %v771
        %v784 = vpack.c.bf16 %v772, %v772
        %v785 = vpack.c.bf16 %v773, %v773
        %v786 = vpack.c.bf16 %v774, %v774
        %v787 = vpack.c.bf16 %v775, %v775
        %v789 = vsel %vm708, %v776, 0
        %v792 = vsel %vm708, %v780, 0
        %794 = vmatprep.subr.bf16.mxu0 0
        %795 = vmatpush1.bf16.xpose.msra.mxu0 %v792
        %796 = vmatprep.subr.bf16.mxu0 0
        %797 = vmatpush1.bf16.xpose.msra.mxu0 0
        %798 = vmatprep.subr.bf16.mxu0 0
        %799 = vmatpush1.bf16.xpose.msra.mxu0 0
        %800 = vmatprep.subr.bf16.mxu0 0
        %801 = vmatpush1.bf16.xpose.msra.mxu0 0
        %802 = vmatprep.subr.bf16.mxu0 0
        %803 = vmatpush1.bf16.xpose.msra.mxu0 0
        %804 = vmatprep.subr.bf16.mxu0 0
        %805 = vmatpush1.bf16.xpose.msra.mxu0 0
        %806 = vmatprep.subr.bf16.mxu0 0
        %807 = vmatpush1.bf16.xpose.msra.mxu0 0
        %808 = vmatprep.subr.bf16.mxu0 0
        %809 = vmatpush1.bf16.xpose.msra.mxu0 0
        %810 = vmatprep.subr.bf16.mxu0 0
        %811 = vmatpush1.bf16.xpose.msra.mxu0 0
        %812 = vmatprep.subr.bf16.mxu0 0
        %813 = vmatpush1.bf16.xpose.msra.mxu0 0
        %814 = vmatprep.subr.bf16.mxu0 0
        %815 = vmatpush1.bf16.xpose.msra.mxu0 0
        %816 = vmatprep.subr.bf16.mxu0 0
        %817 = vmatpush1.bf16.xpose.msra.mxu0 0
        %818 = vmatprep.subr.bf16.mxu0 0
        %819 = vmatpush1.bf16.xpose.msra.mxu0 0
        %820 = vmatprep.subr.bf16.mxu0 0
        %821 = vmatpush1.bf16.xpose.msra.mxu0 0
        %822 = vmatprep.subr.bf16.mxu0 0
        %823 = vmatpush1.bf16.xpose.msra.mxu0 0
        %824 = vmatprep.subr.bf16.mxu0 0
        %825 = vmatpush1.bf16.xpose.msra.mxu0 0
        %826 = vmatprep.mubr.bf16.mxu0 0
        %827 = vmatmul.mubr.bf16.gmra.mrb[0].mxu0 %v789
        %v828 = vpop.f32.mrb[0].mxu0
        %v829 = vadd.f32 0.0, %v828
        %v830 = vpop.f32.mrb[0].mxu0
        %v831 = vpop.f32.mrb[0].mxu0
        %v832 = vpop.f32.mrb[0].mxu0
        %833 = vdwg.mxu0
        %v835 = vsel %vm708, %v777, 0
        %v838 = vsel %vm708, %v781, 0
        %840 = vmatprep.subr.bf16.mxu0 0
        %841 = vmatpush1.bf16.xpose.msra.mxu0 %v838
        %842 = vmatprep.subr.bf16.mxu0 0
        %843 = vmatpush1.bf16.xpose.msra.mxu0 0
        %844 = vmatprep.subr.bf16.mxu0 0
        %845 = vmatpush1.bf16.xpose.msra.mxu0 0
        %846 = vmatprep.subr.bf16.mxu0 0
        %847 = vmatpush1.bf16.xpose.msra.mxu0 0
        %848 = vmatprep.subr.bf16.mxu0 0
        %849 = vmatpush1.bf16.xpose.msra.mxu0 0
        %850 = vmatprep.subr.bf16.mxu0 0
        %851 = vmatpush1.bf16.xpose.msra.mxu0 0
        %852 = vmatprep.subr.bf16.mxu0 0
        %853 = vmatpush1.bf16.xpose.msra.mxu0 0
        %854 = vmatprep.subr.bf16.mxu0 0
        %855 = vmatpush1.bf16.xpose.msra.mxu0 0
        %856 = vmatprep.subr.bf16.mxu0 0
        %857 = vmatpush1.bf16.xpose.msra.mxu0 0
        %858 = vmatprep.subr.bf16.mxu0 0
        %859 = vmatpush1.bf16.xpose.msra.mxu0 0
        %860 = vmatprep.subr.bf16.mxu0 0
        %861 = vmatpush1.bf16.xpose.msra.mxu0 0
        %862 = vmatprep.subr.bf16.mxu0 0
        %863 = vmatpush1.bf16.xpose.msra.mxu0 0
        %864 = vmatprep.subr.bf16.mxu0 0
        %865 = vmatpush1.bf16.xpose.msra.mxu0 0
        %866 = vmatprep.subr.bf16.mxu0 0
        %867 = vmatpush1.bf16.xpose.msra.mxu0 0
        %868 = vmatprep.subr.bf16.mxu0 0
        %869 = vmatpush1.bf16.xpose.msra.mxu0 0
        %870 = vmatprep.subr.bf16.mxu0 0
        %871 = vmatpush1.bf16.xpose.msra.mxu0 0
        %872 = vmatprep.mubr.bf16.mxu0 0
        %873 = vmatmul.mubr.bf16.gmra.mrb[0].mxu0 %v835
        %v874 = vpop.f32.mrb[0].mxu0
        %v875 = vadd.f32 0.0, %v874
        %v876 = vpop.f32.mrb[0].mxu0
        %v877 = vpop.f32.mrb[0].mxu0
        %v878 = vpop.f32.mrb[0].mxu0
        %879 = vdwg.mxu0
        %v881 = vsel %vm708, %v778, 0
        %v884 = vsel %vm708, %v782, 0
        %886 = vmatprep.subr.bf16.mxu0 0
        %887 = vmatpush1.bf16.xpose.msra.mxu0 %v884
        %888 = vmatprep.subr.bf16.mxu0 0
        %889 = vmatpush1.bf16.xpose.msra.mxu0 0
        %890 = vmatprep.subr.bf16.mxu0 0
        %891 = vmatpush1.bf16.xpose.msra.mxu0 0
        %892 = vmatprep.subr.bf16.mxu0 0
        %893 = vmatpush1.bf16.xpose.msra.mxu0 0
        %894 = vmatprep.subr.bf16.mxu0 0
        %895 = vmatpush1.bf16.xpose.msra.mxu0 0
        %896 = vmatprep.subr.bf16.mxu0 0
        %897 = vmatpush1.bf16.xpose.msra.mxu0 0
        %898 = vmatprep.subr.bf16.mxu0 0
        %899 = vmatpush1.bf16.xpose.msra.mxu0 0
        %900 = vmatprep.subr.bf16.mxu0 0
        %901 = vmatpush1.bf16.xpose.msra.mxu0 0
        %902 = vmatprep.subr.bf16.mxu0 0
        %903 = vmatpush1.bf16.xpose.msra.mxu0 0
        %904 = vmatprep.subr.bf16.mxu0 0
        %905 = vmatpush1.bf16.xpose.msra.mxu0 0
        %906 = vmatprep.subr.bf16.mxu0 0
        %907 = vmatpush1.bf16.xpose.msra.mxu0 0
        %908 = vmatprep.subr.bf16.mxu0 0
        %909 = vmatpush1.bf16.xpose.msra.mxu0 0
        %910 = vmatprep.subr.bf16.mxu0 0
        %911 = vmatpush1.bf16.xpose.msra.mxu0 0
        %912 = vmatprep.subr.bf16.mxu0 0
        %913 = vmatpush1.bf16.xpose.msra.mxu0 0
        %914 = vmatprep.subr.bf16.mxu0 0
        %915 = vmatpush1.bf16.xpose.msra.mxu0 0
        %916 = vmatprep.subr.bf16.mxu0 0
        %917 = vmatpush1.bf16.xpose.msra.mxu0 0
        %918 = vmatprep.mubr.bf16.mxu0 0
        %919 = vmatmul.mubr.bf16.gmra.mrb[0].mxu0 %v881
        %v920 = vpop.f32.mrb[0].mxu0
        %v921 = vadd.f32 0.0, %v920
        %v922 = vpop.f32.mrb[0].mxu0
        %v923 = vpop.f32.mrb[0].mxu0
        %v924 = vpop.f32.mrb[0].mxu0
        %925 = vdwg.mxu0
        %v927 = vsel %vm708, %v779, 0
        %v930 = vsel %vm708, %v783, 0
        %932 = vmatprep.subr.bf16.mxu0 0
        %933 = vmatpush1.bf16.xpose.msra.mxu0 %v930
        %934 = vmatprep.subr.bf16.mxu0 0
        %935 = vmatpush1.bf16.xpose.msra.mxu0 0
        %936 = vmatprep.subr.bf16.mxu0 0
        %937 = vmatpush1.bf16.xpose.msra.mxu0 0
        %938 = vmatprep.subr.bf16.mxu0 0
        %939 = vmatpush1.bf16.xpose.msra.mxu0 0
        %940 = vmatprep.subr.bf16.mxu0 0
        %941 = vmatpush1.bf16.xpose.msra.mxu0 0
        %942 = vmatprep.subr.bf16.mxu0 0
        %943 = vmatpush1.bf16.xpose.msra.mxu0 0
        %944 = vmatprep.subr.bf16.mxu0 0
        %945 = vmatpush1.bf16.xpose.msra.mxu0 0
        %946 = vmatprep.subr.bf16.mxu0 0
        %947 = vmatpush1.bf16.xpose.msra.mxu0 0
        %948 = vmatprep.subr.bf16.mxu0 0
        %949 = vmatpush1.bf16.xpose.msra.mxu0 0
        %950 = vmatprep.subr.bf16.mxu0 0
        %951 = vmatpush1.bf16.xpose.msra.mxu0 0
        %952 = vmatprep.subr.bf16.mxu0 0
        %953 = vmatpush1.bf16.xpose.msra.mxu0 0
        %954 = vmatprep.subr.bf16.mxu0 0
        %955 = vmatpush1.bf16.xpose.msra.mxu0 0
        %956 = vmatprep.subr.bf16.mxu0 0
        %957 = vmatpush1.bf16.xpose.msra.mxu0 0
        %958 = vmatprep.subr.bf16.mxu0 0
        %959 = vmatpush1.bf16.xpose.msra.mxu0 0
        %960 = vmatprep.subr.bf16.mxu0 0
        %961 = vmatpush1.bf16.xpose.msra.mxu0 0
        %962 = vmatprep.subr.bf16.mxu0 0
        %963 = vmatpush1.bf16.xpose.msra.mxu0 0
        %964 = vmatprep.mubr.bf16.mxu0 0
        %965 = vmatmul.mubr.bf16.gmra.mrb[0].mxu0 %v927
        %v966 = vpop.f32.mrb[0].mxu0
        %v967 = vadd.f32 0.0, %v966
        %v968 = vpop.f32.mrb[0].mxu0
        %v969 = vpop.f32.mrb[0].mxu0
        %v970 = vpop.f32.mrb[0].mxu0
        %971 = vdwg.mxu0
        %vm972 = vcmask 64512
        %v973 = vsel %vm972, %v829, -inf
        %974 = vmax.xlane.f32.xlu0 %v973
        %v975 = vpop.xlane.xlu0 %974
        %v976 = vsel %vm972, %v875, -inf
        %977 = vmax.xlane.f32.xlu0 %v976
        %v978 = vpop.xlane.xlu0 %977
        %v979 = vsel %vm972, %v921, -inf
        %980 = vmax.xlane.f32.xlu0 %v979
        %v981 = vpop.xlane.xlu0 %980
        %v982 = vsel %vm972, %v967, -inf
        %983 = vmax.xlane.f32.xlu0 %v982
        %v984 = vpop.xlane.xlu0 %983
        %v985 = vsub.f32 %v829, %v975
        %v986 = vsub.f32 %v875, %v978
        %v987 = vsub.f32 %v921, %v981
        %v988 = vsub.f32 %v967, %v984
        %v989 = vmul.f32 %v985, 1.442695
        %v990 = vpow.pop %v989
        %v991 = vmul.f32 %v986, 1.442695
        %v992 = vpow.pop %v991
        %v993 = vmul.f32 %v987, 1.442695
        %v994 = vpow.pop %v993
        %v995 = vmul.f32 %v988, 1.442695
        %v996 = vpow.pop %v995
        %v997 = vsel %vm972, %v990, 0.0
        %998 = vadd.xlane.f32.xlu0 %v997
        %v999 = vpop.xlane.xlu0 %998
        %v1000 = vsel %vm972, %v992, 0.0
        %1001 = vadd.xlane.f32.xlu0 %v1000
        %v1002 = vpop.xlane.xlu0 %1001
        %v1003 = vsel %vm972, %v994, 0.0
        %1004 = vadd.xlane.f32.xlu0 %v1003
        %v1005 = vpop.xlane.xlu0 %1004
        %v1006 = vsel %vm972, %v996, 0.0
        %1007 = vadd.xlane.f32.xlu0 %v1006
        %v1008 = vpop.xlane.xlu0 %1007
        %v1009 = vrcp.pop %v999
        %v1010 = vrcp.pop %v1002
        %v1011 = vrcp.pop %v1005
        %v1012 = vrcp.pop %v1008
        %v1013 = vmul.f32 %v990, %v1009
        %v1014 = vmul.f32 %v992, %v1010
        %v1015 = vmul.f32 %v994, %v1011
        %v1016 = vmul.f32 %v996, %v1012
        %v1017 = vpack.c.bf16 %v1013, %v1013
        %v1018 = vpack.c.bf16 %v1014, %v1014
        %v1019 = vpack.c.bf16 %v1015, %v1015
        %v1020 = vpack.c.bf16 %v1016, %v1016
        %v1022 = vsel %vm972, %v1017, 0
        %vm1024 = vcmask 1043456
        %v1026 = vsel %vm1024, %v784, 0
        %1028 = vmatprep.subr.bf16.mxu0 0
        %1029 = vmatpush1.bf16.msra.mxu0 %v1026
        %1030 = vmatprep.subr.bf16.mxu0 0
        %1031 = vmatpush1.bf16.msra.mxu0 0
        %1032 = vmatprep.subr.bf16.mxu0 0
        %1033 = vmatpush1.bf16.msra.mxu0 0
        %1034 = vmatprep.subr.bf16.mxu0 0
        %1035 = vmatpush1.bf16.msra.mxu0 0
        %1036 = vmatprep.subr.bf16.mxu0 0
        %1037 = vmatpush1.bf16.msra.mxu0 0
        %1038 = vmatprep.subr.bf16.mxu0 0
        %1039 = vmatpush1.bf16.msra.mxu0 0
        %1040 = vmatprep.subr.bf16.mxu0 0
        %1041 = vmatpush1.bf16.msra.mxu0 0
        %1042 = vmatprep.subr.bf16.mxu0 0
        %1043 = vmatpush1.bf16.msra.mxu0 0
        %1044 = vmatprep.subr.bf16.mxu0 0
        %1045 = vmatpush1.bf16.msra.mxu0 0
        %1046 = vmatprep.subr.bf16.mxu0 0
        %1047 = vmatpush1.bf16.msra.mxu0 0
        %1048 = vmatprep.subr.bf16.mxu0 0
        %1049 = vmatpush1.bf16.msra.mxu0 0
        %1050 = vmatprep.subr.bf16.mxu0 0
        %1051 = vmatpush1.bf16.msra.mxu0 0
        %1052 = vmatprep.subr.bf16.mxu0 0
        %1053 = vmatpush1.bf16.msra.mxu0 0
        %1054 = vmatprep.subr.bf16.mxu0 0
        %1055 = vmatpush1.bf16.msra.mxu0 0
        %1056 = vmatprep.subr.bf16.mxu0 0
        %1057 = vmatpush1.bf16.msra.mxu0 0
        %1058 = vmatprep.subr.bf16.mxu0 0
        %1059 = vmatpush1.bf16.msra.mxu0 0
        %1060 = vmatprep.mubr.bf16.mxu0 0
        %1061 = vmatmul.mubr.bf16.gmra.mrb[0].mxu0 %v1022
        %v1062 = vpop.f32.mrb[0].mxu0
        %v1063 = vadd.f32 0.0, %v1062
        %v1064 = vpop.f32.mrb[0].mxu0
        %v1065 = vpop.f32.mrb[0].mxu0
        %v1066 = vpop.f32.mrb[0].mxu0
        %1067 = vdwg.mxu0
        %v1069 = vsel %vm972, %v1018, 0
        %v1072 = vsel %vm1024, %v785, 0
        %1074 = vmatprep.subr.bf16.mxu0 0
        %1075 = vmatpush1.bf16.msra.mxu0 %v1072
        %1076 = vmatprep.subr.bf16.mxu0 0
        %1077 = vmatpush1.bf16.msra.mxu0 0
        %1078 = vmatprep.subr.bf16.mxu0 0
        %1079 = vmatpush1.bf16.msra.mxu0 0
        %1080 = vmatprep.subr.bf16.mxu0 0
        %1081 = vmatpush1.bf16.msra.mxu0 0
        %1082 = vmatprep.subr.bf16.mxu0 0
        %1083 = vmatpush1.bf16.msra.mxu0 0
        %1084 = vmatprep.subr.bf16.mxu0 0
        %1085 = vmatpush1.bf16.msra.mxu0 0
        %1086 = vmatprep.subr.bf16.mxu0 0
        %1087 = vmatpush1.bf16.msra.mxu0 0
        %1088 = vmatprep.subr.bf16.mxu0 0
        %1089 = vmatpush1.bf16.msra.mxu0 0
        %1090 = vmatprep.subr.bf16.mxu0 0
        %1091 = vmatpush1.bf16.msra.mxu0 0
        %1092 = vmatprep.subr.bf16.mxu0 0
        %1093 = vmatpush1.bf16.msra.mxu0 0
        %1094 = vmatprep.subr.bf16.mxu0 0
        %1095 = vmatpush1.bf16.msra.mxu0 0
        %1096 = vmatprep.subr.bf16.mxu0 0
        %1097 = vmatpush1.bf16.msra.mxu0 0
        %1098 = vmatprep.subr.bf16.mxu0 0
        %1099 = vmatpush1.bf16.msra.mxu0 0
        %1100 = vmatprep.subr.bf16.mxu0 0
        %1101 = vmatpush1.bf16.msra.mxu0 0
        %1102 = vmatprep.subr.bf16.mxu0 0
        %1103 = vmatpush1.bf16.msra.mxu0 0
        %1104 = vmatprep.subr.bf16.mxu0 0
        %1105 = vmatpush1.bf16.msra.mxu0 0
        %1106 = vmatprep.mubr.bf16.mxu0 0
        %1107 = vmatmul.mubr.bf16.gmra.mrb[0].mxu0 %v1069
        %v1108 = vpop.f32.mrb[0].mxu0
        %v1109 = vadd.f32 0.0, %v1108
        %v1110 = vpop.f32.mrb[0].mxu0
        %v1111 = vpop.f32.mrb[0].mxu0
        %v1112 = vpop.f32.mrb[0].mxu0
        %1113 = vdwg.mxu0
        %v1115 = vsel %vm972, %v1019, 0
        %v1118 = vsel %vm1024, %v786, 0
        %1120 = vmatprep.subr.bf16.mxu0 0
        %1121 = vmatpush1.bf16.msra.mxu0 %v1118
        %1122 = vmatprep.subr.bf16.mxu0 0
        %1123 = vmatpush1.bf16.msra.mxu0 0
        %1124 = vmatprep.subr.bf16.mxu0 0
        %1125 = vmatpush1.bf16.msra.mxu0 0
        %1126 = vmatprep.subr.bf16.mxu0 0
        %1127 = vmatpush1.bf16.msra.mxu0 0
        %1128 = vmatprep.subr.bf16.mxu0 0
        %1129 = vmatpush1.bf16.msra.mxu0 0
        %1130 = vmatprep.subr.bf16.mxu0 0
        %1131 = vmatpush1.bf16.msra.mxu0 0
        %1132 = vmatprep.subr.bf16.mxu0 0
        %1133 = vmatpush1.bf16.msra.mxu0 0
        %1134 = vmatprep.subr.bf16.mxu0 0
        %1135 = vmatpush1.bf16.msra.mxu0 0
        %1136 = vmatprep.subr.bf16.mxu0 0
        %1137 = vmatpush1.bf16.msra.mxu0 0
        %1138 = vmatprep.subr.bf16.mxu0 0
        %1139 = vmatpush1.bf16.msra.mxu0 0
        %1140 = vmatprep.subr.bf16.mxu0 0
        %1141 = vmatpush1.bf16.msra.mxu0 0
        %1142 = vmatprep.subr.bf16.mxu0 0
        %1143 = vmatpush1.bf16.msra.mxu0 0
        %1144 = vmatprep.subr.bf16.mxu0 0
        %1145 = vmatpush1.bf16.msra.mxu0 0
        %1146 = vmatprep.subr.bf16.mxu0 0
        %1147 = vmatpush1.bf16.msra.mxu0 0
        %1148 = vmatprep.subr.bf16.mxu0 0
        %1149 = vmatpush1.bf16.msra.mxu0 0
        %1150 = vmatprep.subr.bf16.mxu0 0
        %1151 = vmatpush1.bf16.msra.mxu0 0
        %1152 = vmatprep.mubr.bf16.mxu0 0
        %1153 = vmatmul.mubr.bf16.gmra.mrb[0].mxu0 %v1115
        %v1154 = vpop.f32.mrb[0].mxu0
        %v1155 = vadd.f32 0.0, %v1154
        %v1156 = vpop.f32.mrb[0].mxu0
        %v1157 = vpop.f32.mrb[0].mxu0
        %v1158 = vpop.f32.mrb[0].mxu0
        %1159 = vdwg.mxu0
        %v1161 = vsel %vm972, %v1020, 0
        %v1164 = vsel %vm1024, %v787, 0
        %1166 = vmatprep.subr.bf16.mxu0 0
        %1167 = vmatpush1.bf16.msra.mxu0 %v1164
        %1168 = vmatprep.subr.bf16.mxu0 0
        %1169 = vmatpush1.bf16.msra.mxu0 0
        %1170 = vmatprep.subr.bf16.mxu0 0
        %1171 = vmatpush1.bf16.msra.mxu0 0
        %1172 = vmatprep.subr.bf16.mxu0 0
        %1173 = vmatpush1.bf16.msra.mxu0 0
        %1174 = vmatprep.subr.bf16.mxu0 0
        %1175 = vmatpush1.bf16.msra.mxu0 0
        %1176 = vmatprep.subr.bf16.mxu0 0
        %1177 = vmatpush1.bf16.msra.mxu0 0
        %1178 = vmatprep.subr.bf16.mxu0 0
        %1179 = vmatpush1.bf16.msra.mxu0 0
        %1180 = vmatprep.subr.bf16.mxu0 0
        %1181 = vmatpush1.bf16.msra.mxu0 0
        %1182 = vmatprep.subr.bf16.mxu0 0
        %1183 = vmatpush1.bf16.msra.mxu0 0
        %1184 = vmatprep.subr.bf16.mxu0 0
        %1185 = vmatpush1.bf16.msra.mxu0 0
        %1186 = vmatprep.subr.bf16.mxu0 0
        %1187 = vmatpush1.bf16.msra.mxu0 0
        %1188 = vmatprep.subr.bf16.mxu0 0
        %1189 = vmatpush1.bf16.msra.mxu0 0
        %1190 = vmatprep.subr.bf16.mxu0 0
        %1191 = vmatpush1.bf16.msra.mxu0 0
        %1192 = vmatprep.subr.bf16.mxu0 0
        %1193 = vmatpush1.bf16.msra.mxu0 0
        %1194 = vmatprep.subr.bf16.mxu0 0
        %1195 = vmatpush1.bf16.msra.mxu0 0
        %1196 = vmatprep.subr.bf16.mxu0 0
        %1197 = vmatpush1.bf16.msra.mxu0 0
        %1198 = vmatprep.mubr.bf16.mxu0 0
        %1199 = vmatmul.mubr.bf16.gmra.mrb[0].mxu0 %v1161
        %v1200 = vpop.f32.mrb[0].mxu0
        %v1201 = vadd.f32 0.0, %v1200
        %v1202 = vpop.f32.mrb[0].mxu0
        %v1203 = vpop.f32.mrb[0].mxu0
        %v1204 = vpop.f32.mrb[0].mxu0
        %1205 = vdwg.mxu0
        %1207 = vrot.lane.b32.xlu0 %v1109, 16
        %v1208 = vpop.permute.xlu0 %1207
        %1211 = vrot.lane.b32.xlu0 %v1155, 32
        %v1212 = vpop.permute.xlu0 %1211
        %1215 = vrot.lane.b32.xlu0 %v1201, 48
        %v1216 = vpop.permute.xlu0 %1215
        %v1218 = vsel %vm708, %v1063, %v1208
        %v1219 = vsel %vm610, %v1218, %v1212
        %vm1220 = vcmask 392192
        %v1221 = vsel %vm1220, %v1219, %v1216
        %v1222 = vpack.c.bf16 %v1221, %v1221
        %v1223 = vld [vmem:[%s573] sm:$0xf]
        %v1224 = vld [vmem:[%s573 + $0x4] sm:$0xf]
        %v1225 = vld [vmem:[%s573 + $0x8] sm:$0xf]
        %v1226 = vld [vmem:[%s573 + $0xc] sm:$0xf]
        %v1227 = vld [vmem:[%s573 + $0x10] sm:$0xf]
        %v1228 = vld [vmem:[%s573 + $0x14] sm:$0xf]
        %v1229 = vld [vmem:[%s573 + $0x18] sm:$0xf]
        %v1230 = vld [vmem:[%s573 + $0x1c] sm:$0xf]
        %v1231 = vld [vmem:[%s576] sm:$0x1]
        %v1233 = vlaneseq
        %v1234 = vshrl.u32 %v1233, 7
        %v1235 = vsub.s32 0, %v1234
        %v1236 = vrot.slane %v1231, %v1235
        %v1246 = vunpack.c.l.b16 %v1223
        %v1247 = vunpack.c.l.b16 %v1224
        %v1248 = vunpack.c.l.b16 %v1225
        %v1249 = vunpack.c.l.b16 %v1226
        %v1250 = vunpack.c.l.b16 %v1227
        %v1251 = vunpack.c.l.b16 %v1228
        %v1252 = vunpack.c.l.b16 %v1229
        %v1253 = vunpack.c.l.b16 %v1230
        %v1254 = vpack.c.b16 %v1247, %v1246
        %v1255 = vpack.c.b16 %v1249, %v1248
        %v1256 = vpack.c.b16 %v1251, %v1250
        %v1257 = vpack.c.b16 %v1253, %v1252
        %vm1262 = vcmask 523264
        %v1264 = vsel %vm1262, %v1222, 0
        %1266 = vmatprep.subr.bf16.mxu0 0
        %1267 = vmatpush1.bf16.msra.mxu0 %v1254
        %1268 = vmatprep.subr.bf16.mxu0 0
        %1269 = vmatpush1.bf16.msra.mxu0 %v1255
        %1270 = vmatprep.subr.bf16.mxu0 0
        %1271 = vmatpush1.bf16.msra.mxu0 %v1256
        %1272 = vmatprep.subr.bf16.mxu0 0
        %1273 = vmatpush1.bf16.msra.mxu0 %v1257
        %1274 = vmatprep.subr.bf16.mxu0 0
        %1275 = vmatpush1.bf16.msra.mxu0 0
        %1276 = vmatprep.subr.bf16.mxu0 0
        %1277 = vmatpush1.bf16.msra.mxu0 0
        %1278 = vmatprep.subr.bf16.mxu0 0
        %1279 = vmatpush1.bf16.msra.mxu0 0
        %1280 = vmatprep.subr.bf16.mxu0 0
        %1281 = vmatpush1.bf16.msra.mxu0 0
        %1282 = vmatprep.subr.bf16.mxu0 0
        %1283 = vmatpush1.bf16.msra.mxu0 0
        %1284 = vmatprep.subr.bf16.mxu0 0
        %1285 = vmatpush1.bf16.msra.mxu0 0
        %1286 = vmatprep.subr.bf16.mxu0 0
        %1287 = vmatpush1.bf16.msra.mxu0 0
        %1288 = vmatprep.subr.bf16.mxu0 0
        %1289 = vmatpush1.bf16.msra.mxu0 0
        %1290 = vmatprep.subr.bf16.mxu0 0
        %1291 = vmatpush1.bf16.msra.mxu0 0
        %1292 = vmatprep.subr.bf16.mxu0 0
        %1293 = vmatpush1.bf16.msra.mxu0 0
        %1294 = vmatprep.subr.bf16.mxu0 0
        %1295 = vmatpush1.bf16.msra.mxu0 0
        %1296 = vmatprep.subr.bf16.mxu0 0
        %1297 = vmatpush1.bf16.msra.mxu0 0
        %1298 = vmatprep.mubr.bf16.mxu0 0
        %1299 = vmatmul.mubr.bf16.gmra.mrb[0].mxu0 %v1264
        %v1300 = vpop.f32.mrb[0].mxu0
        %v1301 = vadd.f32 %v1236, %v1300
        %v1302 = vpop.f32.mrb[0].mxu0
        %v1303 = vpop.f32.mrb[0].mxu0
        %v1304 = vpop.f32.mrb[0].mxu0
        %1305 = vdwg.mxu0
        %v1306 = vadd.f32 %v607, %v1301
        %v1307 = vld [vmem:[%s579] sm:$0x1]
        %v1308 = vld [vmem:[%s582] sm:$0x1]
        %v1309 = vsel %vm610, %v1306, 0.0
        %1310 = vadd.xlane.f32.xlu0 %v1309
        %v1311 = vpop.xlane.xlu0 %1310
        %v1312 = vmul.f32 %v1311, %v614
        %v1313 = vsub.f32 %v1306, %v1312
        %v1314 = vmul.f32 %v1313, %v1313
        %v1315 = vsel %vm610, %v1314, 0.0
        %1316 = vadd.xlane.f32.xlu0 %v1315
        %v1317 = vpop.xlane.xlu0 %1316
        %v1318 = vmul.f32 %v1317, %v614
        %v1319 = vadd.f32 %v1318, 1e-05
        %v1320 = vrsqrt.pop %v1319
        %v1321 = vmul.f32 %v1313, %v1320
        %v1323 = vlaneseq
        %v1324 = vshrl.u32 %v1323, 7
        %v1325 = vsub.s32 0, %v1324
        %v1326 = vrot.slane %v1307, %v1325
        %v1328 = vmul.f32 %v1321, %v1326
        %v1330 = vlaneseq
        %v1331 = vshrl.u32 %v1330, 7
        %v1332 = vsub.s32 0, %v1331
        %v1333 = vrot.slane %v1308, %v1332
        %v1335 = vadd.f32 %v1328, %v1333
        %v1336 = vpack.c.bf16 %v1335, %v1335
        %v1337 = vld [vmem:[%s587] sm:$0xf]
        %v1338 = vld [vmem:[%s587 + $0x4] sm:$0xf]
        %v1339 = vld [vmem:[%s587 + $0x8] sm:$0xf]
        %v1340 = vld [vmem:[%s587 + $0xc] sm:$0xf]
        %v1341 = vld [vmem:[%s590] sm:$0x1]
        %v1343 = vlaneseq
        %v1344 = vshrl.u32 %v1343, 7
        %v1345 = vsub.s32 0, %v1344
        %v1346 = vrot.slane %v1341, %v1345
        %v1352 = vunpack.c.l.b16 %v1337
        %v1353 = vunpack.c.l.b16 %v1338
        %v1354 = vunpack.c.l.b16 %v1339
        %v1355 = vunpack.c.l.b16 %v1340
        %v1356 = vpack.c.b16 %v1353, %v1352
        %v1357 = vpack.c.b16 %v1355, %v1354
        %v1361 = vsel %vm610, %v1336, 0
        %1363 = vmatprep.subr.bf16.mxu0 0
        %1364 = vmatpush1.bf16.msra.mxu0 %v1356
        %1365 = vmatprep.subr.bf16.mxu0 0
        %1366 = vmatpush1.bf16.msra.mxu0 %v1357
        %1367 = vmatprep.subr.bf16.mxu0 0
        %1368 = vmatpush1.bf16.msra.mxu0 0
        %1369 = vmatprep.subr.bf16.mxu0 0
        %1370 = vmatpush1.bf16.msra.mxu0 0
        %1371 = vmatprep.subr.bf16.mxu0 0
        %1372 = vmatpush1.bf16.msra.mxu0 0
        %1373 = vmatprep.subr.bf16.mxu0 0
        %1374 = vmatpush1.bf16.msra.mxu0 0
        %1375 = vmatprep.subr.bf16.mxu0 0
        %1376 = vmatpush1.bf16.msra.mxu0 0
        %1377 = vmatprep.subr.bf16.mxu0 0
        %1378 = vmatpush1.bf16.msra.mxu0 0
        %1379 = vmatprep.subr.bf16.mxu0 0
        %1380 = vmatpush1.bf16.msra.mxu0 0
        %1381 = vmatprep.subr.bf16.mxu0 0
        %1382 = vmatpush1.bf16.msra.mxu0 0
        %1383 = vmatprep.subr.bf16.mxu0 0
        %1384 = vmatpush1.bf16.msra.mxu0 0
        %1385 = vmatprep.subr.bf16.mxu0 0
        %1386 = vmatpush1.bf16.msra.mxu0 0
        %1387 = vmatprep.subr.bf16.mxu0 0
        %1388 = vmatpush1.bf16.msra.mxu0 0
        %1389 = vmatprep.subr.bf16.mxu0 0
        %1390 = vmatpush1.bf16.msra.mxu0 0
        %1391 = vmatprep.subr.bf16.mxu0 0
        %1392 = vmatpush1.bf16.msra.mxu0 0
        %1393 = vmatprep.subr.bf16.mxu0 0
        %1394 = vmatpush1.bf16.msra.mxu0 0
        %1395 = vmatprep.mubr.bf16.mxu0 0
        %1396 = vmatmul.mubr.bf16.gmra.mrb[0].mxu0 %v1361
        %v1397 = vpop.f32.mrb[0].mxu0
        %v1398 = vadd.f32 %v1346, %v1397
        %v1399 = vpop.f32.mrb[0].mxu0
        %v1400 = vpop.f32.mrb[0].mxu0
        %v1401 = vpop.f32.mrb[0].mxu0
        %1402 = vdwg.mxu0
        %v1403 = vmul.f32 %v1398, 0.5
        %v1404 = vmul.f32 %v1398, 0.70710677
        %v1405 = verf.f32.pop %v1404
        %v1406 = vadd.f32 %v1405, 1.0
        %v1407 = vmul.f32 %v1403, %v1406
        %v1408 = vpack.c.bf16 %v1407, %v1407
        %v1409 = vld [vmem:[%s595] sm:$0xf]
        %v1410 = vld [vmem:[%s595 + $0x4] sm:$0xf]
        %v1411 = vld [vmem:[%s595 + $0x8] sm:$0xf]
        %v1412 = vld [vmem:[%s595 + $0xc] sm:$0xf]
        %v1413 = vld [vmem:[%s595 + $0x10] sm:$0xf]
        %v1414 = vld [vmem:[%s595 + $0x14] sm:$0xf]
        %v1415 = vld [vmem:[%s595 + $0x18] sm:$0xf]
        %v1416 = vld [vmem:[%s595 + $0x1c] sm:$0xf]
        %v1417 = vld [vmem:[%s598] sm:$0x1]
        %v1419 = vlaneseq
        %v1420 = vshrl.u32 %v1419, 7
        %v1421 = vsub.s32 0, %v1420
        %v1422 = vrot.slane %v1417, %v1421
        %v1432 = vunpack.c.l.b16 %v1409
        %v1433 = vunpack.c.l.b16 %v1410
        %v1434 = vunpack.c.l.b16 %v1411
        %v1435 = vunpack.c.l.b16 %v1412
        %v1436 = vunpack.c.l.b16 %v1413
        %v1437 = vunpack.c.l.b16 %v1414
        %v1438 = vunpack.c.l.b16 %v1415
        %v1439 = vunpack.c.l.b16 %v1416
        %v1440 = vpack.c.b16 %v1433, %v1432
        %v1441 = vpack.c.b16 %v1435, %v1434
        %v1442 = vpack.c.b16 %v1437, %v1436
        %v1443 = vpack.c.b16 %v1439, %v1438
        %v1449 = vsel %vm1262, %v1408, 0
        %1451 = vmatprep.subr.bf16.mxu0 0
        %1452 = vmatpush1.bf16.msra.mxu0 %v1440
        %1453 = vmatprep.subr.bf16.mxu0 0
        %1454 = vmatpush1.bf16.msra.mxu0 %v1441
        %1455 = vmatprep.subr.bf16.mxu0 0
        %1456 = vmatpush1.bf16.msra.mxu0 %v1442
        %1457 = vmatprep.subr.bf16.mxu0 0
        %1458 = vmatpush1.bf16.msra.mxu0 %v1443
        %1459 = vmatprep.subr.bf16.mxu0 0
        %1460 = vmatpush1.bf16.msra.mxu0 0
        %1461 = vmatprep.subr.bf16.mxu0 0
        %1462 = vmatpush1.bf16.msra.mxu0 0
        %1463 = vmatprep.subr.bf16.mxu0 0
        %1464 = vmatpush1.bf16.msra.mxu0 0
        %1465 = vmatprep.subr.bf16.mxu0 0
        %1466 = vmatpush1.bf16.msra.mxu0 0
        %1467 = vmatprep.subr.bf16.mxu0 0
        %1468 = vmatpush1.bf16.msra.mxu0 0
        %1469 = vmatprep.subr.bf16.mxu0 0
        %1470 = vmatpush1.bf16.msra.mxu0 0
        %1471 = vmatprep.subr.bf16.mxu0 0
        %1472 = vmatpush1.bf16.msra.mxu0 0
        %1473 = vmatprep.subr.bf16.mxu0 0
        %1474 = vmatpush1.bf16.msra.mxu0 0
        %1475 = vmatprep.subr.bf16.mxu0 0
        %1476 = vmatpush1.bf16.msra.mxu0 0
        %1477 = vmatprep.subr.bf16.mxu0 0
        %1478 = vmatpush1.bf16.msra.mxu0 0
        %1479 = vmatprep.subr.bf16.mxu0 0
        %1480 = vmatpush1.bf16.msra.mxu0 0
        %1481 = vmatprep.subr.bf16.mxu0 0
        %1482 = vmatpush1.bf16.msra.mxu0 0
        %1483 = vmatprep.mubr.bf16.mxu0 0
        %1484 = vmatmul.mubr.bf16.gmra.mrb[0].mxu0 %v1449
        %v1485 = vpop.f32.mrb[0].mxu0
        %v1486 = vadd.f32 %v1422, %v1485
        %v1487 = vpop.f32.mrb[0].mxu0
        %v1488 = vpop.f32.mrb[0].mxu0
        %v1489 = vpop.f32.mrb[0].mxu0
        %1490 = vdwg.mxu0
        %v1491 = vadd.f32 %v1306, %v1486
        %1492 = vst.msk [vmem:[%s553] sm:$0xff] %vm610, %v1491
        %s1493 = sand.u32 %s358, 1
        %s1494 = scalar_lea.sflag [#allocation4], %s1493
        %s1495 = sand.u32 %s358, 1
        %s1496 = smul.addr %s1495, 8
        %s1497 = scalar_lea.vmem [#allocation3], %s1496
        // Predicated region
        $region73: #{tpu_custom_call.1} parent=67 // pred_check
          %p1498 = pneg %p368
        $region74: #{tpu_custom_call.1} parent=67 // pred_check_branch
          %1500 = sbr.rel (%p1498) target = $region76
        $region75: #{tpu_custom_call.1} parent=67 // pred_region
          %s1502 = ssub.s32 128, 128
          %1503 = vsyncadd %s1494, %s1502
          %s1504 = smul.addr %s30, 128
          %s1505 = scalar_lea.hbm %s12, %s1504
          %s1507 = sshll.u32 %s1497, 4
          %s1508 = int_to_ptr.vmem [resolvable:$true] %s1507
          %1510 = dma.vmem_to_hbm [thread:$0]  %s1508, 128, %s1505, %s1494
        $region76: #{tpu_custom_call.1} parent=67 // pred_fallthru
          _
      $region68: #{tpu_custom_call.1} parent=5 // pred_fallthru
        _
      %p1511 = scmp.le.s32.totalorder 2, %s21
      // Predicated region
      $region77: #{tpu_custom_call.1} parent=5 // pred_check
        %p1512 = pneg %p1511
      $region78: #{tpu_custom_call.1} parent=5 // pred_check_branch
        %1514 = sbr.rel (%p1512) target = $region80
      $region79: #{tpu_custom_call.1} parent=5 // pred_region
        %s1515 = ssub.s32 %s21, 2
        // Predicated region
        $region81: #{tpu_custom_call.1} parent=79 // pred_check
          %p1516 = pneg %p374
        $region82: #{tpu_custom_call.1} parent=79 // pred_check_branch
          %1518 = sbr.rel (%p1516) target = $region84
        $region83: #{tpu_custom_call.1} parent=79 // pred_region
          %s1519 = sand.u32 %s359, 1
          %s1520 = scalar_lea.sflag [#allocation4], %s1519
          %s1521 = sand.u32 %s359, 1
          %s1522 = smul.addr %s1521, 8
          %s1523 = scalar_lea.vmem [#allocation3], %s1522
          %1524 = dma.done %s1520, 128
        $region84: #{tpu_custom_call.1} parent=79 // pred_fallthru
          _
      $region80: #{tpu_custom_call.1} parent=5 // pred_fallthru
        _
    $region6: #{tpu_custom_call.1} parent=1 // loop_footer
      %s25 = sadd.s32 1, %s21
    $region7: #{tpu_custom_call.1} parent=1 // loop_footer_branch
      %20 = sbr.rel target = $region3
    $region8: #{tpu_custom_call.1} parent=1 // loop_exit
      _
    %1525 = vsyncpa [#allocation4], 1
    %s1526 = scalar_lea.sflag [#allocation4], 1
    %1527 = vsyncpa %s1526, 1

</llo_original>
